<compile_context>
chip_gen: v5e
topology: v5e:2x2
jax: 0.10.0
libtpu: 0.0.40
codegen_flags: <defaults>
</compile_context>

<pallas_src>
import functools
import math

import jax
import jax.numpy as jnp
import numpy as np
from jax import lax
from jax.experimental import pallas as pl
from jax.experimental.pallas import tpu as pltpu


# ----------------------------------------------------------------------------
# Pallas kernels
# ----------------------------------------------------------------------------
def _branch_kernel(x_ref, wf_ref, bf_ref, whh_ref, bhh_ref,
                   wq1_ref, bq1_ref, wq2_ref, bq2_ref, q_ref,
                   *, batch, seq_len, hidden):
    """One full branch: fused (fc0+W_ih) projection -> GRU -> q1 -> ReLU -> q2.

    x_ref  : (T*B, F)   time-major rows (row = t*B + b)
    wf_ref : (F, 3H)    fused input projection, gate order [r, z, n]
    bf_ref : (1, 3H)
    whh_ref: (H, 3H), bhh_ref: (1, 3H)
    wq1_ref: (H, Q1), bq1_ref: (1, Q1)
    wq2_ref: (Q1, 1), bq2_ref: (1, 1)
    q_ref  : (T*B, 1)   per-frame quality scores
    """
    B, T, H = batch, seq_len, hidden

    # Input-side gate projections for ALL timesteps in one MXU matmul.
    gx = jnp.dot(x_ref[...], wf_ref[...],
                 preferred_element_type=jnp.float32) + bf_ref[...]   # (T*B, 3H)

    whh = whh_ref[...]
    bhh = bhh_ref[...]

    # GRU recurrence: hidden state batched over B, statically unrolled over T.
    h = jnp.zeros((B, H), jnp.float32)
    hs = []
    for t in range(T):
        gh = jnp.dot(h, whh, preferred_element_type=jnp.float32) + bhh  # (B, 3H)
        gxt = gx[t * B:(t + 1) * B, :]                                  # (B, 3H)
        r = jax.nn.sigmoid(gxt[:, 0 * H:1 * H] + gh[:, 0 * H:1 * H])
        z = jax.nn.sigmoid(gxt[:, 1 * H:2 * H] + gh[:, 1 * H:2 * H])
        n = jnp.tanh(gxt[:, 2 * H:3 * H] + r * gh[:, 2 * H:3 * H])
        h = (1.0 - z) * n + z * h
        hs.append(h)
    h_all = jnp.concatenate(hs, axis=0)                                 # (T*B, H)

    # Per-frame quality head: q1 -> ReLU -> (Dropout=id) -> q2, all in VMEM.
    z1 = jnp.maximum(
        jnp.dot(h_all, wq1_ref[...],
                preferred_element_type=jnp.float32) + bq1_ref[...], 0.0)
    q = jnp.dot(z1, wq2_ref[...],
                preferred_element_type=jnp.float32) + bq2_ref[...]
    q_ref[...] = q.astype(q_ref.dtype)


def branch_pipeline(x_s, wf_s, bf_s, whh_s, bhh_s, wq1_s, bq1_s, wq2_s, bq2_s,
                    *, batch, seq_len):
    """Run NB independent branches (grid axis, parallel => 1 per TC on v7x)."""
    NB, TB, F = x_s.shape
    H = whh_s.shape[1]
    G = 3 * H
    Q1 = wq1_s.shape[2]
    kernel = functools.partial(_branch_kernel, batch=batch, seq_len=seq_len,
                               hidden=H)
    return pl.pallas_call(
        kernel,
        out_shape=jax.ShapeDtypeStruct((NB, TB, 1), jnp.float32),
        grid=(NB,),
        in_specs=[
            pl.BlockSpec((None, TB, F), lambda nb: (nb, 0, 0)),
            pl.BlockSpec((None, F, G), lambda nb: (nb, 0, 0)),
            pl.BlockSpec((None, 1, G), lambda nb: (nb, 0, 0)),
            pl.BlockSpec((None, H, G), lambda nb: (nb, 0, 0)),
            pl.BlockSpec((None, 1, G), lambda nb: (nb, 0, 0)),
            pl.BlockSpec((None, H, Q1), lambda nb: (nb, 0, 0)),
            pl.BlockSpec((None, 1, Q1), lambda nb: (nb, 0, 0)),
            pl.BlockSpec((None, Q1, 1), lambda nb: (nb, 0, 0)),
            pl.BlockSpec((None, 1, 1), lambda nb: (nb, 0, 0)),
        ],
        out_specs=pl.BlockSpec((None, TB, 1), lambda nb: (nb, 0, 0)),
        compiler_params=pltpu.CompilerParams(
            dimension_semantics=("parallel",)),
    )(x_s, wf_s, bf_s, whh_s, bhh_s, wq1_s, bq1_s, wq2_s, bq2_s)


def _score_head_kernel(q_ref, w1_ref, b1_ref, w2_ref, b2_ref, w3_ref, b3_ref,
                       o_ref):
    """fc1 -> ReLU -> fc2 -> ReLU -> fc3, intermediates stay in VMEM."""
    h1 = jnp.maximum(
        jnp.dot(q_ref[...], w1_ref[...],
                preferred_element_type=jnp.float32) + b1_ref[...], 0.0)
    h2 = jnp.maximum(
        jnp.dot(h1, w2_ref[...],
                preferred_element_type=jnp.float32) + b2_ref[...], 0.0)
    o_ref[...] = (jnp.dot(h2, w3_ref[...],
                          preferred_element_type=jnp.float32)
                  + b3_ref[...]).astype(o_ref.dtype)


def score_head(q, w1, b1, w2, b2, w3, b3):
    Bq, _ = q.shape
    return pl.pallas_call(
        _score_head_kernel,
        out_shape=jax.ShapeDtypeStruct((Bq, 1), jnp.float32),
    )(q, w1, b1.reshape(1, -1), w2, b2.reshape(1, -1), w3, b3.reshape(1, -1))


# ----------------------------------------------------------------------------
# Parameter initialization (deterministic, PyTorch-style uniform(+-1/sqrt(fan)))
# ----------------------------------------------------------------------------
def _init_linear(key, in_f, out_f):
    k1, k2 = jax.random.split(key)
    bound = 1.0 / math.sqrt(in_f)
    w = jax.random.uniform(k1, (in_f, out_f), jnp.float32, -bound, bound)
    b = jax.random.uniform(k2, (out_f,), jnp.float32, -bound, bound)
    return w, b


def _init_gru(key, in_f, hidden):
    k1, k2, k3, k4 = jax.random.split(key, 4)
    bound = 1.0 / math.sqrt(hidden)
    return dict(
        w_ih_t=jax.random.uniform(k1, (in_f, 3 * hidden), jnp.float32, -bound, bound),
        w_hh_t=jax.random.uniform(k2, (hidden, 3 * hidden), jnp.float32, -bound, bound),
        b_ih=jax.random.uniform(k3, (3 * hidden,), jnp.float32, -bound, bound),
        b_hh=jax.random.uniform(k4, (3 * hidden,), jnp.float32, -bound, bound),
    )


def init_annavqa_params(key, input_size, min_len, reduced_size, hidden_size):
    keys = jax.random.split(key, 11)
    return dict(
        video_ann_fc0=_init_linear(keys[0], input_size, reduced_size),
        audio_ann_fc0=_init_linear(keys[1], input_size, reduced_size),
        video_gru=_init_gru(keys[2], reduced_size, hidden_size),
        audio_gru=_init_gru(keys[3], reduced_size, hidden_size),
        video_q1=_init_linear(keys[4], hidden_size, 512),
        video_q2=_init_linear(keys[5], 512, 1),
        audio_q1=_init_linear(keys[6], hidden_size, 512),
        audio_q2=_init_linear(keys[7], 512, 1),
        fc1=_init_linear(keys[8], min_len, 32),
        fc2=_init_linear(keys[9], 32, 16),
        fc3=_init_linear(keys[10], 16, 1),
    )


def prepare_fused_params(params):
    """Precompute fused (fc0+W_ih) weights and stack the two branches.

    Done ONCE outside the hot path. Valid only because n_ANNlayers=1 (fc0 has
    no activation) and dropout is identity in eval mode.
    """
    def fuse(fc0, gru):
        w0, b0 = fc0
        wf = jnp.dot(w0, gru["w_ih_t"], precision=lax.Precision.HIGHEST)
        bf = jnp.dot(b0, gru["w_ih_t"], precision=lax.Precision.HIGHEST) + gru["b_ih"]
        return wf, bf.reshape(1, -1)

    wf_v, bf_v = fuse(params["video_ann_fc0"], params["video_gru"])
    wf_a, bf_a = fuse(params["audio_ann_fc0"], params["audio_gru"])

    def stack(v, a):
        return jnp.stack([v, a], axis=0)

    return dict(
        wf=stack(wf_v, wf_a),                                          # (2, F, 3H)
        bf=stack(bf_v, bf_a),                                          # (2, 1, 3H)
        whh=stack(params["video_gru"]["w_hh_t"], params["audio_gru"]["w_hh_t"]),
        bhh=stack(params["video_gru"]["b_hh"].reshape(1, -1),
                  params["audio_gru"]["b_hh"].reshape(1, -1)),
        wq1=stack(params["video_q1"][0], params["audio_q1"][0]),       # (2, H, 512)
        bq1=stack(params["video_q1"][1].reshape(1, -1),
                  params["audio_q1"][1].reshape(1, -1)),
        wq2=stack(params["video_q2"][0], params["audio_q2"][0]),       # (2, 512, 1)
        bq2=stack(params["video_q2"][1].reshape(1, -1),
                  params["audio_q2"][1].reshape(1, -1)),
        fc1=params["fc1"], fc2=params["fc2"], fc3=params["fc3"],
    )


# ----------------------------------------------------------------------------
# ANNAVQA forward (Pallas)
# ----------------------------------------------------------------------------
def annavqa_forward(prep, x, input_length, video_length, hidden_size):
    B, T, F = x.shape
    V = int(video_length)
    A = T - V

    # Time-major (T*B, F) layout (row = t*B + b) so the branch kernel needs no
    # in-kernel reshape/transpose.
    xv = jnp.transpose(x[:, :V, :], (1, 0, 2)).reshape(V * B, F)
    xa = jnp.transpose(x[:, V:, :], (1, 0, 2)).reshape(A * B, F)

    def per_branch_q(out_flat, seq_len):
        # (T*B, 1) t-major rows -> (B, T)
        return out_flat.reshape(seq_len, B).T

    names = ("wf", "bf", "whh", "bhh", "wq1", "bq1", "wq2", "bq2")
    if V == A:
        # Single launch, grid over the 2 branches (parallel => one per TC on v7x).
        x_s = jnp.stack([xv, xa], axis=0)
        q_s = branch_pipeline(x_s, *(prep[n] for n in names), batch=B, seq_len=V)
        vq = per_branch_q(q_s[0], V)
        aq = per_branch_q(q_s[1], A)
    else:
        # Unequal sequence lengths: one launch per branch (NB=1).
        outs = []
        for i, (xb, seq_len) in enumerate(((xv, V), (xa, A))):
            args = tuple(prep[n][i:i + 1] for n in names)
            outs.append(per_branch_q(
                branch_pipeline(xb[None], *args, batch=B, seq_len=seq_len)[0],
                seq_len))
        vq, aq = outs

    # torch.cat([video_qi.squeeze(), audio_qi.squeeze()]) per batch element.
    q = jnp.concatenate([vq, aq], axis=1)                              # (B, min_len)

    # Fused fc1 -> ReLU -> fc2 -> ReLU -> fc3 (dropouts = identity).
    s = score_head(q, *prep["fc1"], *prep["fc2"], *prep["fc3"])        # (B, 1)

    # score = torch.zeros_like(input_length); score[i] = fc3(...)
    return s[:, 0].astype(input_length.dtype)


# ----------------------------------------------------------------------------
# Pure-JAX reference (unfused, for correctness check)
# ----------------------------------------------------------------------------
def _ref_dense(x, w, b, act=None):
    y = jnp.dot(x, w, precision=lax.Precision.HIGHEST) + b
    if act == "relu":
        y = jnp.maximum(y, 0.0)
    return y


def _ref_gru(x, g, hidden):
    B, T, _ = x.shape
    H = hidden
    h = jnp.zeros((B, H), jnp.float32)
    outs = []
    for t in range(T):
        gx = _ref_dense(x[:, t, :], g["w_ih_t"], g["b_ih"])
        gh = _ref_dense(h, g["w_hh_t"], g["b_hh"])
        r = jax.nn.sigmoid(gx[:, :H] + gh[:, :H])
        z = jax.nn.sigmoid(gx[:, H:2 * H] + gh[:, H:2 * H])
        n = jnp.tanh(gx[:, 2 * H:] + r * gh[:, 2 * H:])
        h = (1.0 - z) * n + z * h
        outs.append(h)
    return jnp.stack(outs, axis=1)


def reference_forward(params, x, input_length, video_length, hidden_size):
    B, T, F = x.shape
    V = int(video_length)
    A = T - V
    H = hidden_size
    hv_in = _ref_dense(x[:, :V, :].reshape(B * V, F),
                       *params["video_ann_fc0"]).reshape(B, V, -1)
    ha_in = _ref_dense(x[:, V:, :].reshape(B * A, F),
                       *params["audio_ann_fc0"]).reshape(B, A, -1)
    hv = _ref_gru(hv_in, params["video_gru"], H)
    ha = _ref_gru(ha_in, params["audio_gru"], H)
    vq = _ref_dense(_ref_dense(hv.reshape(B * V, H), *params["video_q1"], act="relu"),
                    *params["video_q2"])
    aq = _ref_dense(_ref_dense(ha.reshape(B * A, H), *params["audio_q1"], act="relu"),
                    *params["audio_q2"])
    q = jnp.concatenate([vq.reshape(B, V), aq.reshape(B, A)], axis=1)
    s = _ref_dense(_ref_dense(_ref_dense(q, *params["fc1"], act="relu"),
                              *params["fc2"], act="relu"),
                   *params["fc3"])
    return s[:, 0].astype(input_length.dtype)


# ----------------------------------------------------------------------------
if __name__ == "__main__":
    # Small, module-consistent shapes (real model: 4096/2048/1024, min_len=48).
    INPUT_SIZE = 128   # ANN input_size
    REDUCED = 128      # ANN reduced_size / GRU input
    HIDDEN = 128       # GRU hidden_size
    MIN_LEN = 16       # total sequence length (video + audio frames) fed to fc1
    VIDEO_LEN = 8      # frames belonging to the video branch
    B = 2

    key = jax.random.PRNGKey(0)
    pkey, xkey = jax.random.split(key)
    params = init_annavqa_params(pkey, INPUT_SIZE, MIN_LEN, REDUCED, HIDDEN)
    prep = prepare_fused_params(params)   # one-time weight fusion/stacking

    x = jax.random.normal(xkey, (B, MIN_LEN, INPUT_SIZE), jnp.float32)
    input_length = jnp.full((B,), float(MIN_LEN), jnp.float32)

    score = annavqa_forward(prep, x, input_length, VIDEO_LEN, HIDDEN)
    score = jax.block_until_ready(score)
    assert score.shape == (B,)

    ref = jax.block_until_ready(
        reference_forward(params, x, input_length, VIDEO_LEN, HIDDEN))
    np.testing.assert_allclose(np.asarray(score), np.asarray(ref),
                               rtol=2e-2, atol=2e-2)

    # TODO(synk): when scaling to the real 4096/2048/1024 dims, tile the fused
    # projection over rows/K and cast matmul operands to bf16 (v6e/v7x), keeping
    # the block footprint x2 under v7x's 64 MiB VMEM.
    print("KERNEL_OK")
</pallas_src>

<mosaic_0001>
module attributes {stable_mosaic.version = 11 : i64} {
  func.func @_branch_kernel(%arg0: i32, %arg1: memref<1x16x128xf32, #tpu.memory_space<vmem>>, %arg2: memref<1x128x384xf32, #tpu.memory_space<vmem>>, %arg3: memref<1x1x384xf32, #tpu.memory_space<vmem>>, %arg4: memref<1x128x384xf32, #tpu.memory_space<vmem>>, %arg5: memref<1x1x384xf32, #tpu.memory_space<vmem>>, %arg6: memref<1x128x512xf32, #tpu.memory_space<vmem>>, %arg7: memref<1x1x512xf32, #tpu.memory_space<vmem>>, %arg8: memref<1x512x1xf32, #tpu.memory_space<vmem>>, %arg9: memref<1x1x1xf32, #tpu.memory_space<vmem>>, %arg10: memref<1x16x1xf32, #tpu.memory_space<vmem>>) attributes {dimension_semantics = [#tpu.dimension_semantics<parallel>], iteration_bounds = array<i64: 2>, scalar_prefetch = 0 : i64, scratch_operands = 0 : i64, tpu.core_type = #tpu.core_type<tc>, window_params = [{transform_indices = @transform_0, window_bounds = array<i64: 1, 16, 128>}, {transform_indices = @transform_1, window_bounds = array<i64: 1, 128, 384>}, {transform_indices = @transform_2, window_bounds = array<i64: 1, 1, 384>}, {transform_indices = @transform_3, window_bounds = array<i64: 1, 128, 384>}, {transform_indices = @transform_4, window_bounds = array<i64: 1, 1, 384>}, {transform_indices = @transform_5, window_bounds = array<i64: 1, 128, 512>}, {transform_indices = @transform_6, window_bounds = array<i64: 1, 1, 512>}, {transform_indices = @transform_7, window_bounds = array<i64: 1, 512, 1>}, {transform_indices = @transform_8, window_bounds = array<i64: 1, 1, 1>}, {transform_indices = @transform_9, window_bounds = array<i64: 1, 16, 1>}]} {
    %c0 = arith.constant 0 : index
    %c0_0 = arith.constant 0 : index
    %c0_1 = arith.constant 0 : index
    %0 = vector.load %arg1[%c0, %c0_0, %c0_1] : memref<1x16x128xf32, #tpu.memory_space<vmem>>, vector<1x16x128xf32>
    %1 = vector.shape_cast %0 : vector<1x16x128xf32> to vector<16x128xf32>
    %c0_2 = arith.constant 0 : index
    %c0_3 = arith.constant 0 : index
    %c0_4 = arith.constant 0 : index
    %2 = vector.load %arg2[%c0_2, %c0_3, %c0_4] : memref<1x128x384xf32, #tpu.memory_space<vmem>>, vector<1x128x384xf32>
    %3 = vector.shape_cast %2 : vector<1x128x384xf32> to vector<128x384xf32>
    %cst = arith.constant dense<0.000000e+00> : vector<16x384xf32>
    %4 = tpu.matmul %1, %3, %cst {dimension_numbers = #tpu.dot_dimension_numbers<[1], [0], [0], [1], [0, 0, 1, 1], [], []>} : vector<16x128xf32>, vector<128x384xf32>, vector<16x384xf32> -> vector<16x384xf32>
    %c0_5 = arith.constant 0 : index
    %c0_6 = arith.constant 0 : index
    %c0_7 = arith.constant 0 : index
    %5 = vector.load %arg3[%c0_5, %c0_6, %c0_7] : memref<1x1x384xf32, #tpu.memory_space<vmem>>, vector<1x1x384xf32>
    %6 = vector.shape_cast %5 : vector<1x1x384xf32> to vector<1x384xf32>
    %7 = vector.broadcast %6 : vector<1x384xf32> to vector<16x384xf32>
    %8 = arith.addf %4, %7 : vector<16x384xf32>
    %c0_8 = arith.constant 0 : index
    %c0_9 = arith.constant 0 : index
    %c0_10 = arith.constant 0 : index
    %9 = vector.load %arg4[%c0_8, %c0_9, %c0_10] : memref<1x128x384xf32, #tpu.memory_space<vmem>>, vector<1x128x384xf32>
    %10 = vector.shape_cast %9 : vector<1x128x384xf32> to vector<128x384xf32>
    %c0_11 = arith.constant 0 : index
    %c0_12 = arith.constant 0 : index
    %c0_13 = arith.constant 0 : index
    %11 = vector.load %arg5[%c0_11, %c0_12, %c0_13] : memref<1x1x384xf32, #tpu.memory_space<vmem>>, vector<1x1x384xf32>
    %12 = vector.shape_cast %11 : vector<1x1x384xf32> to vector<1x384xf32>
    %cst_14 = arith.constant 0.000000e+00 : f32
    %13 = vector.broadcast %cst_14 : f32 to vector<2x128xf32>
    %cst_15 = arith.constant dense<0.000000e+00> : vector<2x384xf32>
    %14 = tpu.matmul %13, %10, %cst_15 {dimension_numbers = #tpu.dot_dimension_numbers<[1], [0], [0], [1], [0, 0, 1, 1], [], []>} : vector<2x128xf32>, vector<128x384xf32>, vector<2x384xf32> -> vector<2x384xf32>
    %15 = vector.broadcast %12 : vector<1x384xf32> to vector<2x384xf32>
    %16 = arith.addf %14, %15 : vector<2x384xf32>
    %17 = vector.extract_strided_slice %8 {offsets = [0, 0], sizes = [2, 384], strides = [1, 1]} : vector<16x384xf32> to vector<2x384xf32>
    %18 = vector.extract_strided_slice %17 {offsets = [0, 0], sizes = [2, 128], strides = [1, 1]} : vector<2x384xf32> to vector<2x128xf32>
    %19 = vector.extract_strided_slice %16 {offsets = [0, 0], sizes = [2, 128], strides = [1, 1]} : vector<2x384xf32> to vector<2x128xf32>
    %20 = arith.addf %18, %19 : vector<2x128xf32>
    %21 = arith.negf %20 : vector<2x128xf32>
    %22 = math.exp %21 : vector<2x128xf32>
    %cst_16 = arith.constant 1.000000e+00 : f32
    %23 = vector.broadcast %cst_16 : f32 to vector<2x128xf32>
    %24 = arith.addf %23, %22 : vector<2x128xf32>
    %25 = arith.divf %23, %24 : vector<2x128xf32>
    %26 = vector.extract_strided_slice %17 {offsets = [0, 128], sizes = [2, 128], strides = [1, 1]} : vector<2x384xf32> to vector<2x128xf32>
    %27 = vector.extract_strided_slice %16 {offsets = [0, 128], sizes = [2, 128], strides = [1, 1]} : vector<2x384xf32> to vector<2x128xf32>
    %28 = arith.addf %26, %27 : vector<2x128xf32>
    %29 = arith.negf %28 : vector<2x128xf32>
    %30 = math.exp %29 : vector<2x128xf32>
    %cst_17 = arith.constant 1.000000e+00 : f32
    %31 = vector.broadcast %cst_17 : f32 to vector<2x128xf32>
    %32 = arith.addf %31, %30 : vector<2x128xf32>
    %33 = arith.divf %31, %32 : vector<2x128xf32>
    %34 = vector.extract_strided_slice %17 {offsets = [0, 256], sizes = [2, 128], strides = [1, 1]} : vector<2x384xf32> to vector<2x128xf32>
    %35 = vector.extract_strided_slice %16 {offsets = [0, 256], sizes = [2, 128], strides = [1, 1]} : vector<2x384xf32> to vector<2x128xf32>
    %36 = arith.mulf %25, %35 : vector<2x128xf32>
    %37 = arith.addf %34, %36 : vector<2x128xf32>
    %38 = math.tanh %37 : vector<2x128xf32>
    %cst_18 = arith.constant 1.000000e+00 : f32
    %39 = vector.broadcast %cst_18 : f32 to vector<2x128xf32>
    %40 = arith.subf %39, %33 : vector<2x128xf32>
    %41 = arith.mulf %40, %38 : vector<2x128xf32>
    %42 = arith.mulf %33, %13 : vector<2x128xf32>
    %43 = arith.addf %41, %42 : vector<2x128xf32>
    %cst_19 = arith.constant dense<0.000000e+00> : vector<2x384xf32>
    %44 = tpu.matmul %43, %10, %cst_19 {dimension_numbers = #tpu.dot_dimension_numbers<[1], [0], [0], [1], [0, 0, 1, 1], [], []>} : vector<2x128xf32>, vector<128x384xf32>, vector<2x384xf32> -> vector<2x384xf32>
    %45 = vector.broadcast %12 : vector<1x384xf32> to vector<2x384xf32>
    %46 = arith.addf %44, %45 : vector<2x384xf32>
    %47 = vector.extract_strided_slice %8 {offsets = [2, 0], sizes = [2, 384], strides = [1, 1]} : vector<16x384xf32> to vector<2x384xf32>
    %48 = vector.extract_strided_slice %47 {offsets = [0, 0], sizes = [2, 128], strides = [1, 1]} : vector<2x384xf32> to vector<2x128xf32>
    %49 = vector.extract_strided_slice %46 {offsets = [0, 0], sizes = [2, 128], strides = [1, 1]} : vector<2x384xf32> to vector<2x128xf32>
    %50 = arith.addf %48, %49 : vector<2x128xf32>
    %51 = arith.negf %50 : vector<2x128xf32>
    %52 = math.exp %51 : vector<2x128xf32>
    %cst_20 = arith.constant 1.000000e+00 : f32
    %53 = vector.broadcast %cst_20 : f32 to vector<2x128xf32>
    %54 = arith.addf %53, %52 : vector<2x128xf32>
    %55 = arith.divf %53, %54 : vector<2x128xf32>
    %56 = vector.extract_strided_slice %47 {offsets = [0, 128], sizes = [2, 128], strides = [1, 1]} : vector<2x384xf32> to vector<2x128xf32>
    %57 = vector.extract_strided_slice %46 {offsets = [0, 128], sizes = [2, 128], strides = [1, 1]} : vector<2x384xf32> to vector<2x128xf32>
    %58 = arith.addf %56, %57 : vector<2x128xf32>
    %59 = arith.negf %58 : vector<2x128xf32>
    %60 = math.exp %59 : vector<2x128xf32>
    %cst_21 = arith.constant 1.000000e+00 : f32
    %61 = vector.broadcast %cst_21 : f32 to vector<2x128xf32>
    %62 = arith.addf %61, %60 : vector<2x128xf32>
    %63 = arith.divf %61, %62 : vector<2x128xf32>
    %64 = vector.extract_strided_slice %47 {offsets = [0, 256], sizes = [2, 128], strides = [1, 1]} : vector<2x384xf32> to vector<2x128xf32>
    %65 = vector.extract_strided_slice %46 {offsets = [0, 256], sizes = [2, 128], strides = [1, 1]} : vector<2x384xf32> to vector<2x128xf32>
    %66 = arith.mulf %55, %65 : vector<2x128xf32>
    %67 = arith.addf %64, %66 : vector<2x128xf32>
    %68 = math.tanh %67 : vector<2x128xf32>
    %cst_22 = arith.constant 1.000000e+00 : f32
    %69 = vector.broadcast %cst_22 : f32 to vector<2x128xf32>
    %70 = arith.subf %69, %63 : vector<2x128xf32>
    %71 = arith.mulf %70, %68 : vector<2x128xf32>
    %72 = arith.mulf %63, %43 : vector<2x128xf32>
    %73 = arith.addf %71, %72 : vector<2x128xf32>
    %cst_23 = arith.constant dense<0.000000e+00> : vector<2x384xf32>
    %74 = tpu.matmul %73, %10, %cst_23 {dimension_numbers = #tpu.dot_dimension_numbers<[1], [0], [0], [1], [0, 0, 1, 1], [], []>} : vector<2x128xf32>, vector<128x384xf32>, vector<2x384xf32> -> vector<2x384xf32>
    %75 = vector.broadcast %12 : vector<1x384xf32> to vector<2x384xf32>
    %76 = arith.addf %74, %75 : vector<2x384xf32>
    %77 = vector.extract_strided_slice %8 {offsets = [4, 0], sizes = [2, 384], strides = [1, 1]} : vector<16x384xf32> to vector<2x384xf32>
    %78 = vector.extract_strided_slice %77 {offsets = [0, 0], sizes = [2, 128], strides = [1, 1]} : vector<2x384xf32> to vector<2x128xf32>
    %79 = vector.extract_strided_slice %76 {offsets = [0, 0], sizes = [2, 128], strides = [1, 1]} : vector<2x384xf32> to vector<2x128xf32>
    %80 = arith.addf %78, %79 : vector<2x128xf32>
    %81 = arith.negf %80 : vector<2x128xf32>
    %82 = math.exp %81 : vector<2x128xf32>
    %cst_24 = arith.constant 1.000000e+00 : f32
    %83 = vector.broadcast %cst_24 : f32 to vector<2x128xf32>
    %84 = arith.addf %83, %82 : vector<2x128xf32>
    %85 = arith.divf %83, %84 : vector<2x128xf32>
    %86 = vector.extract_strided_slice %77 {offsets = [0, 128], sizes = [2, 128], strides = [1, 1]} : vector<2x384xf32> to vector<2x128xf32>
    %87 = vector.extract_strided_slice %76 {offsets = [0, 128], sizes = [2, 128], strides = [1, 1]} : vector<2x384xf32> to vector<2x128xf32>
    %88 = arith.addf %86, %87 : vector<2x128xf32>
    %89 = arith.negf %88 : vector<2x128xf32>
    %90 = math.exp %89 : vector<2x128xf32>
    %cst_25 = arith.constant 1.000000e+00 : f32
    %91 = vector.broadcast %cst_25 : f32 to vector<2x128xf32>
    %92 = arith.addf %91, %90 : vector<2x128xf32>
    %93 = arith.divf %91, %92 : vector<2x128xf32>
    %94 = vector.extract_strided_slice %77 {offsets = [0, 256], sizes = [2, 128], strides = [1, 1]} : vector<2x384xf32> to vector<2x128xf32>
    %95 = vector.extract_strided_slice %76 {offsets = [0, 256], sizes = [2, 128], strides = [1, 1]} : vector<2x384xf32> to vector<2x128xf32>
    %96 = arith.mulf %85, %95 : vector<2x128xf32>
    %97 = arith.addf %94, %96 : vector<2x128xf32>
    %98 = math.tanh %97 : vector<2x128xf32>
    %cst_26 = arith.constant 1.000000e+00 : f32
    %99 = vector.broadcast %cst_26 : f32 to vector<2x128xf32>
    %100 = arith.subf %99, %93 : vector<2x128xf32>
    %101 = arith.mulf %100, %98 : vector<2x128xf32>
    %102 = arith.mulf %93, %73 : vector<2x128xf32>
    %103 = arith.addf %101, %102 : vector<2x128xf32>
    %cst_27 = arith.constant dense<0.000000e+00> : vector<2x384xf32>
    %104 = tpu.matmul %103, %10, %cst_27 {dimension_numbers = #tpu.dot_dimension_numbers<[1], [0], [0], [1], [0, 0, 1, 1], [], []>} : vector<2x128xf32>, vector<128x384xf32>, vector<2x384xf32> -> vector<2x384xf32>
    %105 = vector.broadcast %12 : vector<1x384xf32> to vector<2x384xf32>
    %106 = arith.addf %104, %105 : vector<2x384xf32>
    %107 = vector.extract_strided_slice %8 {offsets = [6, 0], sizes = [2, 384], strides = [1, 1]} : vector<16x384xf32> to vector<2x384xf32>
    %108 = vector.extract_strided_slice %107 {offsets = [0, 0], sizes = [2, 128], strides = [1, 1]} : vector<2x384xf32> to vector<2x128xf32>
    %109 = vector.extract_strided_slice %106 {offsets = [0, 0], sizes = [2, 128], strides = [1, 1]} : vector<2x384xf32> to vector<2x128xf32>
    %110 = arith.addf %108, %109 : vector<2x128xf32>
    %111 = arith.negf %110 : vector<2x128xf32>
    %112 = math.exp %111 : vector<2x128xf32>
    %cst_28 = arith.constant 1.000000e+00 : f32
    %113 = vector.broadcast %cst_28 : f32 to vector<2x128xf32>
    %114 = arith.addf %113, %112 : vector<2x128xf32>
    %115 = arith.divf %113, %114 : vector<2x128xf32>
    %116 = vector.extract_strided_slice %107 {offsets = [0, 128], sizes = [2, 128], strides = [1, 1]} : vector<2x384xf32> to vector<2x128xf32>
    %117 = vector.extract_strided_slice %106 {offsets = [0, 128], sizes = [2, 128], strides = [1, 1]} : vector<2x384xf32> to vector<2x128xf32>
    %118 = arith.addf %116, %117 : vector<2x128xf32>
    %119 = arith.negf %118 : vector<2x128xf32>
    %120 = math.exp %119 : vector<2x128xf32>
    %cst_29 = arith.constant 1.000000e+00 : f32
    %121 = vector.broadcast %cst_29 : f32 to vector<2x128xf32>
    %122 = arith.addf %121, %120 : vector<2x128xf32>
    %123 = arith.divf %121, %122 : vector<2x128xf32>
    %124 = vector.extract_strided_slice %107 {offsets = [0, 256], sizes = [2, 128], strides = [1, 1]} : vector<2x384xf32> to vector<2x128xf32>
    %125 = vector.extract_strided_slice %106 {offsets = [0, 256], sizes = [2, 128], strides = [1, 1]} : vector<2x384xf32> to vector<2x128xf32>
    %126 = arith.mulf %115, %125 : vector<2x128xf32>
    %127 = arith.addf %124, %126 : vector<2x128xf32>
    %128 = math.tanh %127 : vector<2x128xf32>
    %cst_30 = arith.constant 1.000000e+00 : f32
    %129 = vector.broadcast %cst_30 : f32 to vector<2x128xf32>
    %130 = arith.subf %129, %123 : vector<2x128xf32>
    %131 = arith.mulf %130, %128 : vector<2x128xf32>
    %132 = arith.mulf %123, %103 : vector<2x128xf32>
    %133 = arith.addf %131, %132 : vector<2x128xf32>
    %cst_31 = arith.constant dense<0.000000e+00> : vector<2x384xf32>
    %134 = tpu.matmul %133, %10, %cst_31 {dimension_numbers = #tpu.dot_dimension_numbers<[1], [0], [0], [1], [0, 0, 1, 1], [], []>} : vector<2x128xf32>, vector<128x384xf32>, vector<2x384xf32> -> vector<2x384xf32>
    %135 = vector.broadcast %12 : vector<1x384xf32> to vector<2x384xf32>
    %136 = arith.addf %134, %135 : vector<2x384xf32>
    %137 = vector.extract_strided_slice %8 {offsets = [8, 0], sizes = [2, 384], strides = [1, 1]} : vector<16x384xf32> to vector<2x384xf32>
    %138 = vector.extract_strided_slice %137 {offsets = [0, 0], sizes = [2, 128], strides = [1, 1]} : vector<2x384xf32> to vector<2x128xf32>
    %139 = vector.extract_strided_slice %136 {offsets = [0, 0], sizes = [2, 128], strides = [1, 1]} : vector<2x384xf32> to vector<2x128xf32>
    %140 = arith.addf %138, %139 : vector<2x128xf32>
    %141 = arith.negf %140 : vector<2x128xf32>
    %142 = math.exp %141 : vector<2x128xf32>
    %cst_32 = arith.constant 1.000000e+00 : f32
    %143 = vector.broadcast %cst_32 : f32 to vector<2x128xf32>
    %144 = arith.addf %143, %142 : vector<2x128xf32>
    %145 = arith.divf %143, %144 : vector<2x128xf32>
    %146 = vector.extract_strided_slice %137 {offsets = [0, 128], sizes = [2, 128], strides = [1, 1]} : vector<2x384xf32> to vector<2x128xf32>
    %147 = vector.extract_strided_slice %136 {offsets = [0, 128], sizes = [2, 128], strides = [1, 1]} : vector<2x384xf32> to vector<2x128xf32>
    %148 = arith.addf %146, %147 : vector<2x128xf32>
    %149 = arith.negf %148 : vector<2x128xf32>
    %150 = math.exp %149 : vector<2x128xf32>
    %cst_33 = arith.constant 1.000000e+00 : f32
    %151 = vector.broadcast %cst_33 : f32 to vector<2x128xf32>
    %152 = arith.addf %151, %150 : vector<2x128xf32>
    %153 = arith.divf %151, %152 : vector<2x128xf32>
    %154 = vector.extract_strided_slice %137 {offsets = [0, 256], sizes = [2, 128], strides = [1, 1]} : vector<2x384xf32> to vector<2x128xf32>
    %155 = vector.extract_strided_slice %136 {offsets = [0, 256], sizes = [2, 128], strides = [1, 1]} : vector<2x384xf32> to vector<2x128xf32>
    %156 = arith.mulf %145, %155 : vector<2x128xf32>
    %157 = arith.addf %154, %156 : vector<2x128xf32>
    %158 = math.tanh %157 : vector<2x128xf32>
    %cst_34 = arith.constant 1.000000e+00 : f32
    %159 = vector.broadcast %cst_34 : f32 to vector<2x128xf32>
    %160 = arith.subf %159, %153 : vector<2x128xf32>
    %161 = arith.mulf %160, %158 : vector<2x128xf32>
    %162 = arith.mulf %153, %133 : vector<2x128xf32>
    %163 = arith.addf %161, %162 : vector<2x128xf32>
    %cst_35 = arith.constant dense<0.000000e+00> : vector<2x384xf32>
    %164 = tpu.matmul %163, %10, %cst_35 {dimension_numbers = #tpu.dot_dimension_numbers<[1], [0], [0], [1], [0, 0, 1, 1], [], []>} : vector<2x128xf32>, vector<128x384xf32>, vector<2x384xf32> -> vector<2x384xf32>
    %165 = vector.broadcast %12 : vector<1x384xf32> to vector<2x384xf32>
    %166 = arith.addf %164, %165 : vector<2x384xf32>
    %167 = vector.extract_strided_slice %8 {offsets = [10, 0], sizes = [2, 384], strides = [1, 1]} : vector<16x384xf32> to vector<2x384xf32>
    %168 = vector.extract_strided_slice %167 {offsets = [0, 0], sizes = [2, 128], strides = [1, 1]} : vector<2x384xf32> to vector<2x128xf32>
    %169 = vector.extract_strided_slice %166 {offsets = [0, 0], sizes = [2, 128], strides = [1, 1]} : vector<2x384xf32> to vector<2x128xf32>
    %170 = arith.addf %168, %169 : vector<2x128xf32>
    %171 = arith.negf %170 : vector<2x128xf32>
    %172 = math.exp %171 : vector<2x128xf32>
    %cst_36 = arith.constant 1.000000e+00 : f32
    %173 = vector.broadcast %cst_36 : f32 to vector<2x128xf32>
    %174 = arith.addf %173, %172 : vector<2x128xf32>
    %175 = arith.divf %173, %174 : vector<2x128xf32>
    %176 = vector.extract_strided_slice %167 {offsets = [0, 128], sizes = [2, 128], strides = [1, 1]} : vector<2x384xf32> to vector<2x128xf32>
    %177 = vector.extract_strided_slice %166 {offsets = [0, 128], sizes = [2, 128], strides = [1, 1]} : vector<2x384xf32> to vector<2x128xf32>
    %178 = arith.addf %176, %177 : vector<2x128xf32>
    %179 = arith.negf %178 : vector<2x128xf32>
    %180 = math.exp %179 : vector<2x128xf32>
    %cst_37 = arith.constant 1.000000e+00 : f32
    %181 = vector.broadcast %cst_37 : f32 to vector<2x128xf32>
    %182 = arith.addf %181, %180 : vector<2x128xf32>
    %183 = arith.divf %181, %182 : vector<2x128xf32>
    %184 = vector.extract_strided_slice %167 {offsets = [0, 256], sizes = [2, 128], strides = [1, 1]} : vector<2x384xf32> to vector<2x128xf32>
    %185 = vector.extract_strided_slice %166 {offsets = [0, 256], sizes = [2, 128], strides = [1, 1]} : vector<2x384xf32> to vector<2x128xf32>
    %186 = arith.mulf %175, %185 : vector<2x128xf32>
    %187 = arith.addf %184, %186 : vector<2x128xf32>
    %188 = math.tanh %187 : vector<2x128xf32>
    %cst_38 = arith.constant 1.000000e+00 : f32
    %189 = vector.broadcast %cst_38 : f32 to vector<2x128xf32>
    %190 = arith.subf %189, %183 : vector<2x128xf32>
    %191 = arith.mulf %190, %188 : vector<2x128xf32>
    %192 = arith.mulf %183, %163 : vector<2x128xf32>
    %193 = arith.addf %191, %192 : vector<2x128xf32>
    %cst_39 = arith.constant dense<0.000000e+00> : vector<2x384xf32>
    %194 = tpu.matmul %193, %10, %cst_39 {dimension_numbers = #tpu.dot_dimension_numbers<[1], [0], [0], [1], [0, 0, 1, 1], [], []>} : vector<2x128xf32>, vector<128x384xf32>, vector<2x384xf32> -> vector<2x384xf32>
    %195 = vector.broadcast %12 : vector<1x384xf32> to vector<2x384xf32>
    %196 = arith.addf %194, %195 : vector<2x384xf32>
    %197 = vector.extract_strided_slice %8 {offsets = [12, 0], sizes = [2, 384], strides = [1, 1]} : vector<16x384xf32> to vector<2x384xf32>
    %198 = vector.extract_strided_slice %197 {offsets = [0, 0], sizes = [2, 128], strides = [1, 1]} : vector<2x384xf32> to vector<2x128xf32>
    %199 = vector.extract_strided_slice %196 {offsets = [0, 0], sizes = [2, 128], strides = [1, 1]} : vector<2x384xf32> to vector<2x128xf32>
    %200 = arith.addf %198, %199 : vector<2x128xf32>
    %201 = arith.negf %200 : vector<2x128xf32>
    %202 = math.exp %201 : vector<2x128xf32>
    %cst_40 = arith.constant 1.000000e+00 : f32
    %203 = vector.broadcast %cst_40 : f32 to vector<2x128xf32>
    %204 = arith.addf %203, %202 : vector<2x128xf32>
    %205 = arith.divf %203, %204 : vector<2x128xf32>
    %206 = vector.extract_strided_slice %197 {offsets = [0, 128], sizes = [2, 128], strides = [1, 1]} : vector<2x384xf32> to vector<2x128xf32>
    %207 = vector.extract_strided_slice %196 {offsets = [0, 128], sizes = [2, 128], strides = [1, 1]} : vector<2x384xf32> to vector<2x128xf32>
    %208 = arith.addf %206, %207 : vector<2x128xf32>
    %209 = arith.negf %208 : vector<2x128xf32>
    %210 = math.exp %209 : vector<2x128xf32>
    %cst_41 = arith.constant 1.000000e+00 : f32
    %211 = vector.broadcast %cst_41 : f32 to vector<2x128xf32>
    %212 = arith.addf %211, %210 : vector<2x128xf32>
    %213 = arith.divf %211, %212 : vector<2x128xf32>
    %214 = vector.extract_strided_slice %197 {offsets = [0, 256], sizes = [2, 128], strides = [1, 1]} : vector<2x384xf32> to vector<2x128xf32>
    %215 = vector.extract_strided_slice %196 {offsets = [0, 256], sizes = [2, 128], strides = [1, 1]} : vector<2x384xf32> to vector<2x128xf32>
    %216 = arith.mulf %205, %215 : vector<2x128xf32>
    %217 = arith.addf %214, %216 : vector<2x128xf32>
    %218 = math.tanh %217 : vector<2x128xf32>
    %cst_42 = arith.constant 1.000000e+00 : f32
    %219 = vector.broadcast %cst_42 : f32 to vector<2x128xf32>
    %220 = arith.subf %219, %213 : vector<2x128xf32>
    %221 = arith.mulf %220, %218 : vector<2x128xf32>
    %222 = arith.mulf %213, %193 : vector<2x128xf32>
    %223 = arith.addf %221, %222 : vector<2x128xf32>
    %cst_43 = arith.constant dense<0.000000e+00> : vector<2x384xf32>
    %224 = tpu.matmul %223, %10, %cst_43 {dimension_numbers = #tpu.dot_dimension_numbers<[1], [0], [0], [1], [0, 0, 1, 1], [], []>} : vector<2x128xf32>, vector<128x384xf32>, vector<2x384xf32> -> vector<2x384xf32>
    %225 = vector.broadcast %12 : vector<1x384xf32> to vector<2x384xf32>
    %226 = arith.addf %224, %225 : vector<2x384xf32>
    %227 = vector.extract_strided_slice %8 {offsets = [14, 0], sizes = [2, 384], strides = [1, 1]} : vector<16x384xf32> to vector<2x384xf32>
    %228 = vector.extract_strided_slice %227 {offsets = [0, 0], sizes = [2, 128], strides = [1, 1]} : vector<2x384xf32> to vector<2x128xf32>
    %229 = vector.extract_strided_slice %226 {offsets = [0, 0], sizes = [2, 128], strides = [1, 1]} : vector<2x384xf32> to vector<2x128xf32>
    %230 = arith.addf %228, %229 : vector<2x128xf32>
    %231 = arith.negf %230 : vector<2x128xf32>
    %232 = math.exp %231 : vector<2x128xf32>
    %cst_44 = arith.constant 1.000000e+00 : f32
    %233 = vector.broadcast %cst_44 : f32 to vector<2x128xf32>
    %234 = arith.addf %233, %232 : vector<2x128xf32>
    %235 = arith.divf %233, %234 : vector<2x128xf32>
    %236 = vector.extract_strided_slice %227 {offsets = [0, 128], sizes = [2, 128], strides = [1, 1]} : vector<2x384xf32> to vector<2x128xf32>
    %237 = vector.extract_strided_slice %226 {offsets = [0, 128], sizes = [2, 128], strides = [1, 1]} : vector<2x384xf32> to vector<2x128xf32>
    %238 = arith.addf %236, %237 : vector<2x128xf32>
    %239 = arith.negf %238 : vector<2x128xf32>
    %240 = math.exp %239 : vector<2x128xf32>
    %cst_45 = arith.constant 1.000000e+00 : f32
    %241 = vector.broadcast %cst_45 : f32 to vector<2x128xf32>
    %242 = arith.addf %241, %240 : vector<2x128xf32>
    %243 = arith.divf %241, %242 : vector<2x128xf32>
    %244 = vector.extract_strided_slice %227 {offsets = [0, 256], sizes = [2, 128], strides = [1, 1]} : vector<2x384xf32> to vector<2x128xf32>
    %245 = vector.extract_strided_slice %226 {offsets = [0, 256], sizes = [2, 128], strides = [1, 1]} : vector<2x384xf32> to vector<2x128xf32>
    %246 = arith.mulf %235, %245 : vector<2x128xf32>
    %247 = arith.addf %244, %246 : vector<2x128xf32>
    %248 = math.tanh %247 : vector<2x128xf32>
    %cst_46 = arith.constant 1.000000e+00 : f32
    %249 = vector.broadcast %cst_46 : f32 to vector<2x128xf32>
    %250 = arith.subf %249, %243 : vector<2x128xf32>
    %251 = arith.mulf %250, %248 : vector<2x128xf32>
    %252 = arith.mulf %243, %223 : vector<2x128xf32>
    %253 = arith.addf %251, %252 : vector<2x128xf32>
    %254 = tpu.concatenate %43, %73, %103, %133, %163, %193, %223, %253 in 0 : vector<2x128xf32>, vector<2x128xf32>, vector<2x128xf32>, vector<2x128xf32>, vector<2x128xf32>, vector<2x128xf32>, vector<2x128xf32>, vector<2x128xf32> -> vector<16x128xf32>
    %c0_47 = arith.constant 0 : index
    %c0_48 = arith.constant 0 : index
    %c0_49 = arith.constant 0 : index
    %255 = vector.load %arg6[%c0_47, %c0_48, %c0_49] : memref<1x128x512xf32, #tpu.memory_space<vmem>>, vector<1x128x512xf32>
    %256 = vector.shape_cast %255 : vector<1x128x512xf32> to vector<128x512xf32>
    %cst_50 = arith.constant dense<0.000000e+00> : vector<16x512xf32>
    %257 = tpu.matmul %254, %256, %cst_50 {dimension_numbers = #tpu.dot_dimension_numbers<[1], [0], [0], [1], [0, 0, 1, 1], [], []>} : vector<16x128xf32>, vector<128x512xf32>, vector<16x512xf32> -> vector<16x512xf32>
    %c0_51 = arith.constant 0 : index
    %c0_52 = arith.constant 0 : index
    %c0_53 = arith.constant 0 : index
    %258 = vector.load %arg7[%c0_51, %c0_52, %c0_53] : memref<1x1x512xf32, #tpu.memory_space<vmem>>, vector<1x1x512xf32>
    %259 = vector.shape_cast %258 : vector<1x1x512xf32> to vector<1x512xf32>
    %260 = vector.broadcast %259 : vector<1x512xf32> to vector<16x512xf32>
    %261 = arith.addf %257, %260 : vector<16x512xf32>
    %cst_54 = arith.constant 0.000000e+00 : f32
    %262 = vector.broadcast %cst_54 : f32 to vector<16x512xf32>
    %263 = arith.maximumf %261, %262 : vector<16x512xf32>
    %c0_55 = arith.constant 0 : index
    %c0_56 = arith.constant 0 : index
    %c0_57 = arith.constant 0 : index
    %264 = vector.load %arg8[%c0_55, %c0_56, %c0_57] : memref<1x512x1xf32, #tpu.memory_space<vmem>>, vector<1x512x1xf32>
    %265 = vector.shape_cast %264 : vector<1x512x1xf32> to vector<512x1xf32>
    %cst_58 = arith.constant dense<0.000000e+00> : vector<16x1xf32>
    %266 = tpu.matmul %263, %265, %cst_58 {dimension_numbers = #tpu.dot_dimension_numbers<[1], [0], [0], [1], [0, 0, 1, 1], [], []>} : vector<16x512xf32>, vector<512x1xf32>, vector<16x1xf32> -> vector<16x1xf32>
    %c0_59 = arith.constant 0 : index
    %c0_60 = arith.constant 0 : index
    %c0_61 = arith.constant 0 : index
    %267 = vector.load %arg9[%c0_59, %c0_60, %c0_61] : memref<1x1x1xf32, #tpu.memory_space<vmem>>, vector<1x1x1xf32>
    %268 = vector.shape_cast %267 : vector<1x1x1xf32> to vector<1x1xf32>
    %269 = vector.broadcast %268 : vector<1x1xf32> to vector<16x1xf32>
    %270 = arith.addf %266, %269 : vector<16x1xf32>
    %c0_62 = arith.constant 0 : index
    %c0_63 = arith.constant 0 : index
    %c0_64 = arith.constant 0 : index
    %271 = vector.load %arg10[%c0_62, %c0_63, %c0_64] : memref<1x16x1xf32, #tpu.memory_space<vmem>>, vector<1x16x1xf32>
    %272 = vector.shape_cast %271 : vector<1x16x1xf32> to vector<16x1xf32>
    %273 = vector.shape_cast %270 : vector<16x1xf32> to vector<1x16x1xf32>
    tpu.vector_store %arg10[%c0_62, %c0_63, %c0_64], %273 {strides = array<i32>} : memref<1x16x1xf32, #tpu.memory_space<vmem>>, vector<1x16x1xf32>,
    return
  }
  func.func @transform_0(%arg0: i32) -> (i32, i32, i32) {
    %c0_i32 = arith.constant 0 : i32
    %c0_i32_0 = arith.constant 0 : i32
    %c0_i32_1 = arith.constant 0 : i32
    return %arg0, %c0_i32, %c0_i32_0 : i32, i32, i32
  }
  func.func @transform_1(%arg0: i32) -> (i32, i32, i32) {
    %c0_i32 = arith.constant 0 : i32
    %c0_i32_0 = arith.constant 0 : i32
    %c0_i32_1 = arith.constant 0 : i32
    return %arg0, %c0_i32, %c0_i32_0 : i32, i32, i32
  }
  func.func @transform_2(%arg0: i32) -> (i32, i32, i32) {
    %c0_i32 = arith.constant 0 : i32
    %c0_i32_0 = arith.constant 0 : i32
    %c0_i32_1 = arith.constant 0 : i32
    return %arg0, %c0_i32, %c0_i32_0 : i32, i32, i32
  }
  func.func @transform_3(%arg0: i32) -> (i32, i32, i32) {
    %c0_i32 = arith.constant 0 : i32
    %c0_i32_0 = arith.constant 0 : i32
    %c0_i32_1 = arith.constant 0 : i32
    return %arg0, %c0_i32, %c0_i32_0 : i32, i32, i32
  }
  func.func @transform_4(%arg0: i32) -> (i32, i32, i32) {
    %c0_i32 = arith.constant 0 : i32
    %c0_i32_0 = arith.constant 0 : i32
    %c0_i32_1 = arith.constant 0 : i32
    return %arg0, %c0_i32, %c0_i32_0 : i32, i32, i32
  }
  func.func @transform_5(%arg0: i32) -> (i32, i32, i32) {
    %c0_i32 = arith.constant 0 : i32
    %c0_i32_0 = arith.constant 0 : i32
    %c0_i32_1 = arith.constant 0 : i32
    return %arg0, %c0_i32, %c0_i32_0 : i32, i32, i32
  }
  func.func @transform_6(%arg0: i32) -> (i32, i32, i32) {
    %c0_i32 = arith.constant 0 : i32
    %c0_i32_0 = arith.constant 0 : i32
    %c0_i32_1 = arith.constant 0 : i32
    return %arg0, %c0_i32, %c0_i32_0 : i32, i32, i32
  }
  func.func @transform_7(%arg0: i32) -> (i32, i32, i32) {
    %c0_i32 = arith.constant 0 : i32
    %c0_i32_0 = arith.constant 0 : i32
    %c0_i32_1 = arith.constant 0 : i32
    return %arg0, %c0_i32, %c0_i32_0 : i32, i32, i32
  }
  func.func @transform_8(%arg0: i32) -> (i32, i32, i32) {
    %c0_i32 = arith.constant 0 : i32
    %c0_i32_0 = arith.constant 0 : i32
    %c0_i32_1 = arith.constant 0 : i32
    return %arg0, %c0_i32, %c0_i32_0 : i32, i32, i32
  }
  func.func @transform_9(%arg0: i32) -> (i32, i32, i32) {
    %c0_i32 = arith.constant 0 : i32
    %c0_i32_0 = arith.constant 0 : i32
    %c0_i32_1 = arith.constant 0 : i32
    return %arg0, %c0_i32, %c0_i32_0 : i32, i32, i32
  }
}

</mosaic_0001>

<llo_original>
// kernel: tpu_custom_call.1
$region0: #{tpu_custom_call.1}
  #allocation0 [shape = 'u32[]', space=smem, size = 0x4, offset = 0x4, fixed_abs, tag = 'smem constant byte address 0x4 - core index']
  #allocation1 [shape = 'u32[72,128]{1,0:T(1,128)}', space=vmem, size = 0x9000, scoped, tag = 'internal scratch']
  %s0 = inlined_call_operand.hbm [shape: f32[2,16,128], index: 0, kind: input, shape index: {}]
  %s1 = inlined_call_operand.hbm [shape: f32[2,128,384], index: 1, kind: input, shape index: {}]
  %s2 = inlined_call_operand.hbm [shape: f32[2,1,384], index: 2, kind: input, shape index: {}]
  %s3 = inlined_call_operand.hbm [shape: f32[2,128,384], index: 3, kind: input, shape index: {}]
  %s4 = inlined_call_operand.hbm [shape: f32[2,1,384], index: 4, kind: input, shape index: {}]
  %s5 = inlined_call_operand.vmem [shape: f32[2,128,512], index: 5, kind: input, shape index: {}]
  %s6 = inlined_call_operand.vmem [shape: f32[2,1,512], index: 6, kind: input, shape index: {}]
  %s7 = inlined_call_operand.vmem [shape: f32[2,512,1], index: 7, kind: input, shape index: {}]
  %s8 = inlined_call_operand.vmem [shape: f32[2,1,1], index: 8, kind: input, shape index: {}]
  %s9 = inlined_call_operand.vmem [shape: f32[2,16,1], index: 9, kind: output, shape index: {}]
  %s10 = sld [smem:[#allocation0]]
  $region89: #{tpu_custom_call.1} parent=0
    _
  %s12 = ssub.s32 1, %s10
  %s13 = scalar_select 0, %s12, %s10
  $region1: #{tpu_custom_call.1} parent=0
    #allocation2 [shape = 'u8[16384]{0}', space=vmem, size = 0x4000, scoped, tag = 'input window, operand 0']
    #allocation3 [shape = 's32[2]{0}', space=sflag, size = 0x8, scoped, tag = 'scoped memory for tpu_custom_call.1']
    #allocation4 [shape = 'u8[393216]{0}', space=vmem, size = 0x60000, scoped, tag = 'input window, operand 1']
    #allocation5 [shape = 's32[2]{0}', space=sflag, size = 0x8, scoped, tag = 'scoped memory for tpu_custom_call.1']
    #allocation6 [shape = 'u8[3072]{0}', space=vmem, size = 0xc00, scoped, tag = 'input window, operand 2']
    #allocation7 [shape = 'u8[393216]{0}', space=vmem, size = 0x60000, scoped, tag = 'input window, operand 3']
    #allocation8 [shape = 's32[2]{0}', space=sflag, size = 0x8, scoped, tag = 'scoped memory for tpu_custom_call.1']
    #allocation9 [shape = 'u8[3072]{0}', space=vmem, size = 0xc00, scoped, tag = 'input window, operand 4']
    %14 = vsyncpa [#allocation3], 0
    %s15 = scalar_lea.sflag [#allocation3], 1
    %16 = vsyncpa %s15, 0
    %17 = vsyncpa [#allocation5], 0
    %s18 = scalar_lea.sflag [#allocation5], 1
    %19 = vsyncpa %s18, 0
    %20 = vsyncpa [#allocation8], 0
    %s21 = scalar_lea.sflag [#allocation8], 1
    %22 = vsyncpa %s21, 0
    loop: start=0, step=1, limit=4
    $region2: #{tpu_custom_call.1} parent=1 // loop_pre_header
      _
    $region3: #{tpu_custom_call.1} parent=1 // loop_header
      %s24 = sphi 0, %s28
      %p25 = scmp.ge.s32.totalorder %s24, 4
      %s34 = sphi 0, %s36
      %s37 = sphi 0, %s34
      %s38 = sphi 0, %s37
      %s54 = sphi 0, %s38
      %s60 = sphi 0, %s62
      %s63 = sphi 0, %s60
      %s64 = sphi 0, %s63
      %s80 = sphi 0, %s64
      %s86 = sphi 0, %s88
      %s89 = sphi 0, %s86
      %s90 = sphi 0, %s89
      %s106 = sphi 0, %s90
      %s112 = sphi 0, %s114
      %s115 = sphi 0, %s112
      %s116 = sphi 0, %s115
      %s132 = sphi 0, %s116
      %s138 = sphi 0, %s140
      %s141 = sphi 0, %s138
      %s142 = sphi 0, %s141
      %s158 = sphi 0, %s142
      %s164 = sphi 0, %s166
      %s167 = sphi 0, %s164
      %s168 = sphi 0, %s167
      %s184 = sphi 0, %s168
      %s190 = sphi 0, %s192
      %s193 = sphi 0, %s190
      %s194 = sphi 0, %s193
      %s210 = sphi 0, %s194
      %s216 = sphi 0, %s218
      %s219 = sphi 0, %s216
      %s220 = sphi 0, %s219
      %s236 = sphi 0, %s220
      %s242 = sphi 0, %s244
      %s245 = sphi 0, %s242
      %s246 = sphi 0, %s245
      %s262 = sphi 0, %s246
      %s268 = sphi 0, %s270
      %s271 = sphi 0, %s268
      %s272 = sphi 0, %s271
      %s288 = sphi 0, %s272
    $region4: #{tpu_custom_call.1} parent=1 // loop_header_branch
      %27 = sbr.rel (%p25) target = $region8
    $region5: #{tpu_custom_call.1} parent=1 // loop_body
      %s29 = ssub.s32 %s24, 1
      %s30 = ssub.s32 %s24, 2
      %s31 = sadd.s32 %s24, 1
      %s32 = ssub.s32 %s24, %s31
      %p33 = scmp.eq.s32.totalorder %s32, 0
      %s35 = sadd.s32 %s34, 1
      %s36 = scalar_select %p33, %s34, %s35
      %p39 = pneg %p33
      %p40 = scmp.eq.s32.totalorder %s24, 1
      %p41 = por %p39, %p40
      %p42 = scmp.ne.s32.totalorder %s34, %s37
      %p43 = scmp.eq.s32.totalorder %s24, 0
      %p44 = por %p42, %p43
      %p45 = scmp.ne.s32.totalorder %s34, %s37
      %p46 = scmp.eq.s32.totalorder %s29, 1
      %p47 = por %p45, %p46
      %p48 = scmp.ne.s32.totalorder %s37, %s38
      %p49 = scmp.eq.s32.totalorder %s29, 0
      %p50 = por %p48, %p49
      %p51 = scmp.ne.s32.totalorder %s37, %s38
      %p52 = scmp.eq.s32.totalorder %s30, 1
      %p53 = por %p51, %p52
      %p55 = scmp.ne.s32.totalorder %s38, %s54
      %p56 = scmp.eq.s32.totalorder %s30, 0
      %p57 = por %p55, %p56
      %s58 = ssub.s32 %s24, %s31
      %p59 = scmp.eq.s32.totalorder %s58, 0
      %s61 = sadd.s32 %s60, 1
      %s62 = scalar_select %p59, %s60, %s61
      %p65 = pneg %p59
      %p66 = scmp.eq.s32.totalorder %s24, 1
      %p67 = por %p65, %p66
      %p68 = scmp.ne.s32.totalorder %s60, %s63
      %p69 = scmp.eq.s32.totalorder %s24, 0
      %p70 = por %p68, %p69
      %p71 = scmp.ne.s32.totalorder %s60, %s63
      %p72 = scmp.eq.s32.totalorder %s29, 1
      %p73 = por %p71, %p72
      %p74 = scmp.ne.s32.totalorder %s63, %s64
      %p75 = scmp.eq.s32.totalorder %s29, 0
      %p76 = por %p74, %p75
      %p77 = scmp.ne.s32.totalorder %s63, %s64
      %p78 = scmp.eq.s32.totalorder %s30, 1
      %p79 = por %p77, %p78
      %p81 = scmp.ne.s32.totalorder %s64, %s80
      %p82 = scmp.eq.s32.totalorder %s30, 0
      %p83 = por %p81, %p82
      %s84 = ssub.s32 %s24, %s31
      %p85 = scmp.eq.s32.totalorder %s84, 0
      %s87 = sadd.s32 %s86, 1
      %s88 = scalar_select %p85, %s86, %s87
      %p91 = pneg %p85
      %p92 = scmp.eq.s32.totalorder %s24, 1
      %p93 = por %p91, %p92
      %p94 = scmp.ne.s32.totalorder %s86, %s89
      %p95 = scmp.eq.s32.totalorder %s24, 0
      %p96 = por %p94, %p95
      %p97 = scmp.ne.s32.totalorder %s86, %s89
      %p98 = scmp.eq.s32.totalorder %s29, 1
      %p99 = por %p97, %p98
      %p100 = scmp.ne.s32.totalorder %s89, %s90
      %p101 = scmp.eq.s32.totalorder %s29, 0
      %p102 = por %p100, %p101
      %p103 = scmp.ne.s32.totalorder %s89, %s90
      %p104 = scmp.eq.s32.totalorder %s30, 1
      %p105 = por %p103, %p104
      %p107 = scmp.ne.s32.totalorder %s90, %s106
      %p108 = scmp.eq.s32.totalorder %s30, 0
      %p109 = por %p107, %p108
      %s110 = ssub.s32 %s24, %s31
      %p111 = scmp.eq.s32.totalorder %s110, 0
      %s113 = sadd.s32 %s112, 1
      %s114 = scalar_select %p111, %s112, %s113
      %p117 = pneg %p111
      %p118 = scmp.eq.s32.totalorder %s24, 1
      %p119 = por %p117, %p118
      %p120 = scmp.ne.s32.totalorder %s112, %s115
      %p121 = scmp.eq.s32.totalorder %s24, 0
      %p122 = por %p120, %p121
      %p123 = scmp.ne.s32.totalorder %s112, %s115
      %p124 = scmp.eq.s32.totalorder %s29, 1
      %p125 = por %p123, %p124
      %p126 = scmp.ne.s32.totalorder %s115, %s116
      %p127 = scmp.eq.s32.totalorder %s29, 0
      %p128 = por %p126, %p127
      %p129 = scmp.ne.s32.totalorder %s115, %s116
      %p130 = scmp.eq.s32.totalorder %s30, 1
      %p131 = por %p129, %p130
      %p133 = scmp.ne.s32.totalorder %s116, %s132
      %p134 = scmp.eq.s32.totalorder %s30, 0
      %p135 = por %p133, %p134
      %s136 = ssub.s32 %s24, %s31
      %p137 = scmp.eq.s32.totalorder %s136, 0
      %s139 = sadd.s32 %s138, 1
      %s140 = scalar_select %p137, %s138, %s139
      %p143 = pneg %p137
      %p144 = scmp.eq.s32.totalorder %s24, 1
      %p145 = por %p143, %p144
      %p146 = scmp.ne.s32.totalorder %s138, %s141
      %p147 = scmp.eq.s32.totalorder %s24, 0
      %p148 = por %p146, %p147
      %p149 = scmp.ne.s32.totalorder %s138, %s141
      %p150 = scmp.eq.s32.totalorder %s29, 1
      %p151 = por %p149, %p150
      %p152 = scmp.ne.s32.totalorder %s141, %s142
      %p153 = scmp.eq.s32.totalorder %s29, 0
      %p154 = por %p152, %p153
      %p155 = scmp.ne.s32.totalorder %s141, %s142
      %p156 = scmp.eq.s32.totalorder %s30, 1
      %p157 = por %p155, %p156
      %p159 = scmp.ne.s32.totalorder %s142, %s158
      %p160 = scmp.eq.s32.totalorder %s30, 0
      %p161 = por %p159, %p160
      %s162 = ssub.s32 %s24, %s31
      %p163 = scmp.eq.s32.totalorder %s162, 0
      %s165 = sadd.s32 %s164, 1
      %s166 = scalar_select %p163, %s164, %s165
      %p169 = pneg %p163
      %p170 = scmp.eq.s32.totalorder %s24, 1
      %p171 = por %p169, %p170
      %p172 = scmp.ne.s32.totalorder %s164, %s167
      %p173 = scmp.eq.s32.totalorder %s24, 0
      %p174 = por %p172, %p173
      %p175 = scmp.ne.s32.totalorder %s164, %s167
      %p176 = scmp.eq.s32.totalorder %s29, 1
      %p177 = por %p175, %p176
      %p178 = scmp.ne.s32.totalorder %s167, %s168
      %p179 = scmp.eq.s32.totalorder %s29, 0
      %p180 = por %p178, %p179
      %p181 = scmp.ne.s32.totalorder %s167, %s168
      %p182 = scmp.eq.s32.totalorder %s30, 1
      %p183 = por %p181, %p182
      %p185 = scmp.ne.s32.totalorder %s168, %s184
      %p186 = scmp.eq.s32.totalorder %s30, 0
      %p187 = por %p185, %p186
      %s188 = ssub.s32 %s24, %s31
      %p189 = scmp.eq.s32.totalorder %s188, 0
      %s191 = sadd.s32 %s190, 1
      %s192 = scalar_select %p189, %s190, %s191
      %p195 = pneg %p189
      %p196 = scmp.eq.s32.totalorder %s24, 1
      %p197 = por %p195, %p196
      %p198 = scmp.ne.s32.totalorder %s190, %s193
      %p199 = scmp.eq.s32.totalorder %s24, 0
      %p200 = por %p198, %p199
      %p201 = scmp.ne.s32.totalorder %s190, %s193
      %p202 = scmp.eq.s32.totalorder %s29, 1
      %p203 = por %p201, %p202
      %p204 = scmp.ne.s32.totalorder %s193, %s194
      %p205 = scmp.eq.s32.totalorder %s29, 0
      %p206 = por %p204, %p205
      %p207 = scmp.ne.s32.totalorder %s193, %s194
      %p208 = scmp.eq.s32.totalorder %s30, 1
      %p209 = por %p207, %p208
      %p211 = scmp.ne.s32.totalorder %s194, %s210
      %p212 = scmp.eq.s32.totalorder %s30, 0
      %p213 = por %p211, %p212
      %s214 = ssub.s32 %s24, %s31
      %p215 = scmp.eq.s32.totalorder %s214, 0
      %s217 = sadd.s32 %s216, 1
      %s218 = scalar_select %p215, %s216, %s217
      %p221 = pneg %p215
      %p222 = scmp.eq.s32.totalorder %s24, 1
      %p223 = por %p221, %p222
      %p224 = scmp.ne.s32.totalorder %s216, %s219
      %p225 = scmp.eq.s32.totalorder %s24, 0
      %p226 = por %p224, %p225
      %p227 = scmp.ne.s32.totalorder %s216, %s219
      %p228 = scmp.eq.s32.totalorder %s29, 1
      %p229 = por %p227, %p228
      %p230 = scmp.ne.s32.totalorder %s219, %s220
      %p231 = scmp.eq.s32.totalorder %s29, 0
      %p232 = por %p230, %p231
      %p233 = scmp.ne.s32.totalorder %s219, %s220
      %p234 = scmp.eq.s32.totalorder %s30, 1
      %p235 = por %p233, %p234
      %p237 = scmp.ne.s32.totalorder %s220, %s236
      %p238 = scmp.eq.s32.totalorder %s30, 0
      %p239 = por %p237, %p238
      %s240 = ssub.s32 %s24, %s31
      %p241 = scmp.eq.s32.totalorder %s240, 0
      %s243 = sadd.s32 %s242, 1
      %s244 = scalar_select %p241, %s242, %s243
      %p247 = pneg %p241
      %p248 = scmp.eq.s32.totalorder %s24, 1
      %p249 = por %p247, %p248
      %p250 = scmp.ne.s32.totalorder %s242, %s245
      %p251 = scmp.eq.s32.totalorder %s24, 0
      %p252 = por %p250, %p251
      %p253 = scmp.ne.s32.totalorder %s242, %s245
      %p254 = scmp.eq.s32.totalorder %s29, 1
      %p255 = por %p253, %p254
      %p256 = scmp.ne.s32.totalorder %s245, %s246
      %p257 = scmp.eq.s32.totalorder %s29, 0
      %p258 = por %p256, %p257
      %p259 = scmp.ne.s32.totalorder %s245, %s246
      %p260 = scmp.eq.s32.totalorder %s30, 1
      %p261 = por %p259, %p260
      %p263 = scmp.ne.s32.totalorder %s246, %s262
      %p264 = scmp.eq.s32.totalorder %s30, 0
      %p265 = por %p263, %p264
      %s266 = ssub.s32 %s24, %s31
      %p267 = scmp.eq.s32.totalorder %s266, 0
      %s269 = sadd.s32 %s268, 1
      %s270 = scalar_select %p267, %s268, %s269
      %p273 = pneg %p267
      %p274 = scmp.eq.s32.totalorder %s24, 1
      %p275 = por %p273, %p274
      %p276 = scmp.ne.s32.totalorder %s268, %s271
      %p277 = scmp.eq.s32.totalorder %s24, 0
      %p278 = por %p276, %p277
      %p279 = scmp.ne.s32.totalorder %s268, %s271
      %p280 = scmp.eq.s32.totalorder %s29, 1
      %p281 = por %p279, %p280
      %p282 = scmp.ne.s32.totalorder %s271, %s272
      %p283 = scmp.eq.s32.totalorder %s29, 0
      %p284 = por %p282, %p283
      %p285 = scmp.ne.s32.totalorder %s271, %s272
      %p286 = scmp.eq.s32.totalorder %s30, 1
      %p287 = por %p285, %p286
      %p289 = scmp.ne.s32.totalorder %s272, %s288
      %p290 = scmp.eq.s32.totalorder %s30, 0
      %p291 = por %p289, %p290
      %p292 = scmp.le.s32.totalorder 1, %s24
      %p293 = scmp.lt.s32.totalorder %s24, 3
      %p294 = pnand %p292, %p293
      %p295 = pneg %p294
      // Predicated region
      $region9: #{tpu_custom_call.1} parent=5 // pred_check
        _
      $region10: #{tpu_custom_call.1} parent=5 // pred_check_branch
        %297 = sbr.rel (%p294) target = $region12
      $region11: #{tpu_custom_call.1} parent=5 // pred_region
        %s298 = ssub.s32 %s24, 1
      $region12: #{tpu_custom_call.1} parent=5 // pred_fallthru
        _
      %p299 = scmp.lt.s32.totalorder %s24, 2
      // Predicated region
      $region13: #{tpu_custom_call.1} parent=5 // pred_check
        %p300 = pneg %p299
      $region14: #{tpu_custom_call.1} parent=5 // pred_check_branch
        %302 = sbr.rel (%p300) target = $region16
      $region15: #{tpu_custom_call.1} parent=5 // pred_region
        // Predicated region
        $region17: #{tpu_custom_call.1} parent=15 // pred_check
          %p303 = pneg %p44
        $region18: #{tpu_custom_call.1} parent=15 // pred_check_branch
          %305 = sbr.rel (%p303) target = $region20
        $region19: #{tpu_custom_call.1} parent=15 // pred_region
          %s306 = sand.u32 %s34, 1
          %s307 = scalar_lea.sflag [#allocation3], %s306
          %s308 = sand.u32 %s34, 1
          %s309 = smul.addr %s308, 16
          %s310 = scalar_lea.vmem [#allocation2], %s309
          %312 = vsyncadd %s307, 0
          %s313 = smul.addr %s24, 2
          %s314 = smul.addr %s313, 8
          %s315 = scalar_lea.hbm %s0, %s314
          %s316 = sshll.u32 %s315, 4
          %s317 = int_to_ptr.hbm [resolvable:$true] %s316
          %s318 = sshll.u32 %s310, 4
          %s319 = int_to_ptr.vmem [resolvable:$true] %s318
          %324 = dma.hbm_to_vmem [thread:$0]  %s317, 256, %s319, %s307, 128, 128, 8
        $region20: #{tpu_custom_call.1} parent=15 // pred_fallthru
          _
        // Predicated region
        $region21: #{tpu_custom_call.1} parent=15 // pred_check
          %p325 = pneg %p70
        $region22: #{tpu_custom_call.1} parent=15 // pred_check_branch
          %327 = sbr.rel (%p325) target = $region24
        $region23: #{tpu_custom_call.1} parent=15 // pred_region
          %s328 = sand.u32 %s24, 1
          %s329 = scalar_lea.sflag [#allocation5], %s328
          %s330 = sand.u32 %s60, 1
          %s331 = smul.addr %s330, 384
          %s332 = scalar_lea.vmem [#allocation4], %s331
          %334 = vsyncadd %s329, 0
          %s335 = smul.addr %s24, 48
          %s336 = smul.addr %s335, 8
          %s337 = scalar_lea.hbm %s1, %s336
          %s338 = sshll.u32 %s337, 4
          %s339 = int_to_ptr.hbm [resolvable:$true] %s338
          %s340 = sshll.u32 %s332, 4
          %s341 = int_to_ptr.vmem [resolvable:$true] %s340
          %346 = dma.hbm_to_vmem [thread:$0]  %s339, 6144, %s341, %s329, 384, 384, 24
        $region24: #{tpu_custom_call.1} parent=15 // pred_fallthru
          _
        // Predicated region
        $region25: #{tpu_custom_call.1} parent=15 // pred_check
          %p347 = pneg %p96
        $region26: #{tpu_custom_call.1} parent=15 // pred_check_branch
          %349 = sbr.rel (%p347) target = $region28
        $region27: #{tpu_custom_call.1} parent=15 // pred_region
          %s350 = sand.u32 %s24, 1
          %s351 = scalar_lea.sflag [#allocation5], %s350
          %s352 = sand.u32 %s86, 1
          %s353 = smul.addr %s352, 3
          %s354 = scalar_lea.vmem [#allocation6], %s353
          %356 = vsyncadd %s351, 0
          %s357 = smul.addr %s24, 3
          %s358 = scalar_lea.hbm %s2, %s357
          %s360 = sshll.u32 %s358, 4
          %s361 = int_to_ptr.hbm [resolvable:$true] %s360
          %s362 = sshll.u32 %s354, 4
          %s363 = int_to_ptr.vmem [resolvable:$true] %s362
          %365 = dma.hbm_to_vmem [thread:$0]  %s361, 48, %s363, %s351
        $region28: #{tpu_custom_call.1} parent=15 // pred_fallthru
          _
        // Predicated region
        $region29: #{tpu_custom_call.1} parent=15 // pred_check
          %p366 = pneg %p122
        $region30: #{tpu_custom_call.1} parent=15 // pred_check_branch
          %368 = sbr.rel (%p366) target = $region32
        $region31: #{tpu_custom_call.1} parent=15 // pred_region
          %s369 = sand.u32 %s24, 1
          %s370 = scalar_lea.sflag [#allocation8], %s369
          %s371 = sand.u32 %s112, 1
          %s372 = smul.addr %s371, 384
          %s373 = scalar_lea.vmem [#allocation7], %s372
          %375 = vsyncadd %s370, 0
          %s376 = smul.addr %s24, 48
          %s377 = smul.addr %s376, 8
          %s378 = scalar_lea.hbm %s3, %s377
          %s379 = sshll.u32 %s378, 4
          %s380 = int_to_ptr.hbm [resolvable:$true] %s379
          %s381 = sshll.u32 %s373, 4
          %s382 = int_to_ptr.vmem [resolvable:$true] %s381
          %387 = dma.hbm_to_vmem [thread:$0]  %s380, 6144, %s382, %s370, 384, 384, 24
        $region32: #{tpu_custom_call.1} parent=15 // pred_fallthru
          _
        // Predicated region
        $region33: #{tpu_custom_call.1} parent=15 // pred_check
          %p388 = pneg %p148
        $region34: #{tpu_custom_call.1} parent=15 // pred_check_branch
          %390 = sbr.rel (%p388) target = $region36
        $region35: #{tpu_custom_call.1} parent=15 // pred_region
          %s391 = sand.u32 %s24, 1
          %s392 = scalar_lea.sflag [#allocation8], %s391
          %s393 = sand.u32 %s138, 1
          %s394 = smul.addr %s393, 3
          %s395 = scalar_lea.vmem [#allocation9], %s394
          %397 = vsyncadd %s392, 0
          %s398 = smul.addr %s24, 3
          %s399 = scalar_lea.hbm %s4, %s398
          %s401 = sshll.u32 %s399, 4
          %s402 = int_to_ptr.hbm [resolvable:$true] %s401
          %s403 = sshll.u32 %s395, 4
          %s404 = int_to_ptr.vmem [resolvable:$true] %s403
          %406 = dma.hbm_to_vmem [thread:$0]  %s402, 48, %s404, %s392
        $region36: #{tpu_custom_call.1} parent=15 // pred_fallthru
          _
        // Predicated region
        $region37: #{tpu_custom_call.1} parent=15 // pred_check
          %p407 = pneg %p174
        $region38: #{tpu_custom_call.1} parent=15 // pred_check_branch
          %409 = sbr.rel (%p407) target = $region40
        $region39: #{tpu_custom_call.1} parent=15 // pred_region
          %p410 = scmp.lt.s32.totalorder %s24, 1
          %s411 = scalar_select %p410, %s24, 1
          %s412 = smul.addr %s411, 64
          %s413 = smul.addr %s412, 8
          %s414 = scalar_lea.vmem %s5, %s413
        $region40: #{tpu_custom_call.1} parent=15 // pred_fallthru
          _
        // Predicated region
        $region41: #{tpu_custom_call.1} parent=15 // pred_check
          %p415 = pneg %p200
        $region42: #{tpu_custom_call.1} parent=15 // pred_check_branch
          %417 = sbr.rel (%p415) target = $region44
        $region43: #{tpu_custom_call.1} parent=15 // pred_region
          %p418 = scmp.lt.s32.totalorder %s24, 1
          %s419 = scalar_select %p418, %s24, 1
          %s420 = smul.addr %s419, 4
          %s421 = scalar_lea.vmem %s6, %s420
        $region44: #{tpu_custom_call.1} parent=15 // pred_fallthru
          _
        // Predicated region
        $region45: #{tpu_custom_call.1} parent=15 // pred_check
          %p422 = pneg %p226
        $region46: #{tpu_custom_call.1} parent=15 // pred_check_branch
          %424 = sbr.rel (%p422) target = $region48
        $region47: #{tpu_custom_call.1} parent=15 // pred_region
          %p425 = scmp.lt.s32.totalorder %s24, 1
          %s426 = scalar_select %p425, %s24, 1
          %s427 = smul.addr %s426, 64
          %s428 = smul.addr %s427, 8
          %s429 = scalar_lea.vmem %s7, %s428
        $region48: #{tpu_custom_call.1} parent=15 // pred_fallthru
          _
        // Predicated region
        $region49: #{tpu_custom_call.1} parent=15 // pred_check
          %p430 = pneg %p252
        $region50: #{tpu_custom_call.1} parent=15 // pred_check_branch
          %432 = sbr.rel (%p430) target = $region52
        $region51: #{tpu_custom_call.1} parent=15 // pred_region
          %p433 = scmp.lt.s32.totalorder %s24, 1
          %s434 = scalar_select %p433, %s24, 1
          %s435 = scalar_lea.vmem %s8, %s434
        $region52: #{tpu_custom_call.1} parent=15 // pred_fallthru
          _
      $region16: #{tpu_custom_call.1} parent=5 // pred_fallthru
        _
      %p436 = scmp.le.s32.totalorder 1, %s24
      %p437 = scmp.lt.s32.totalorder %s24, 3
      %p438 = pnand %p436, %p437
      %p439 = pneg %p438
      // Predicated region
      $region53: #{tpu_custom_call.1} parent=5 // pred_check
        _
      $region54: #{tpu_custom_call.1} parent=5 // pred_check_branch
        %441 = sbr.rel (%p438) target = $region56
      $region55: #{tpu_custom_call.1} parent=5 // pred_region
        %s442 = ssub.s32 %s24, 1
        %s443 = sand.u32 %s37, 1
        %s444 = scalar_lea.sflag [#allocation3], %s443
        %s445 = sand.u32 %s37, 1
        %s446 = smul.addr %s445, 16
        %s447 = scalar_lea.vmem [#allocation2], %s446
        // Predicated region
        $region57: #{tpu_custom_call.1} parent=55 // pred_check
          %p448 = pneg %p50
        $region58: #{tpu_custom_call.1} parent=55 // pred_check_branch
          %450 = sbr.rel (%p448) target = $region60
        $region59: #{tpu_custom_call.1} parent=55 // pred_region
          %452 = dma.done %s444, 256
        $region60: #{tpu_custom_call.1} parent=55 // pred_fallthru
          _
        %s453 = sand.u32 %s29, 1
        %s454 = scalar_lea.sflag [#allocation5], %s453
        %s455 = sand.u32 %s63, 1
        %s456 = smul.addr %s455, 384
        %s457 = scalar_lea.vmem [#allocation4], %s456
        // Predicated region
        $region61: #{tpu_custom_call.1} parent=55 // pred_check
          %p458 = pneg %p76
        $region62: #{tpu_custom_call.1} parent=55 // pred_check_branch
          %460 = sbr.rel (%p458) target = $region64
        $region63: #{tpu_custom_call.1} parent=55 // pred_region
          %462 = dma.done %s454, 6144
        $region64: #{tpu_custom_call.1} parent=55 // pred_fallthru
          _
        %s463 = sand.u32 %s29, 1
        %s464 = scalar_lea.sflag [#allocation5], %s463
        %s465 = sand.u32 %s89, 1
        %s466 = smul.addr %s465, 3
        %s467 = scalar_lea.vmem [#allocation6], %s466
        // Predicated region
        $region65: #{tpu_custom_call.1} parent=55 // pred_check
          %p468 = pneg %p102
        $region66: #{tpu_custom_call.1} parent=55 // pred_check_branch
          %470 = sbr.rel (%p468) target = $region68
        $region67: #{tpu_custom_call.1} parent=55 // pred_region
          %472 = dma.done %s464, 48
        $region68: #{tpu_custom_call.1} parent=55 // pred_fallthru
          _
        %s473 = sand.u32 %s29, 1
        %s474 = scalar_lea.sflag [#allocation8], %s473
        %s475 = sand.u32 %s115, 1
        %s476 = smul.addr %s475, 384
        %s477 = scalar_lea.vmem [#allocation7], %s476
        // Predicated region
        $region69: #{tpu_custom_call.1} parent=55 // pred_check
          %p478 = pneg %p128
        $region70: #{tpu_custom_call.1} parent=55 // pred_check_branch
          %480 = sbr.rel (%p478) target = $region72
        $region71: #{tpu_custom_call.1} parent=55 // pred_region
          %482 = dma.done %s474, 6144
        $region72: #{tpu_custom_call.1} parent=55 // pred_fallthru
          _
        %s483 = sand.u32 %s29, 1
        %s484 = scalar_lea.sflag [#allocation8], %s483
        %s485 = sand.u32 %s141, 1
        %s486 = smul.addr %s485, 3
        %s487 = scalar_lea.vmem [#allocation9], %s486
        // Predicated region
        $region73: #{tpu_custom_call.1} parent=55 // pred_check
          %p488 = pneg %p154
        $region74: #{tpu_custom_call.1} parent=55 // pred_check_branch
          %490 = sbr.rel (%p488) target = $region76
        $region75: #{tpu_custom_call.1} parent=55 // pred_region
          %492 = dma.done %s484, 48
        $region76: #{tpu_custom_call.1} parent=55 // pred_fallthru
          _
        %s493 = sand.u32 %s37, 1
        %s494 = scalar_lea.sflag [#allocation3], %s493
        %s495 = sand.u32 %s37, 1
        %s496 = smul.addr %s495, 16
        %s497 = scalar_lea.vmem [#allocation2], %s496
        %p498 = pneg %p50
        %p499 = pneg %p47
        %s500 = sand.u32 %s29, 1
        %s501 = scalar_lea.sflag [#allocation5], %s500
        %s502 = sand.u32 %s63, 1
        %s503 = smul.addr %s502, 384
        %s504 = scalar_lea.vmem [#allocation4], %s503
        %p505 = pneg %p76
        %p506 = pneg %p73
        %s507 = sand.u32 %s29, 1
        %s508 = scalar_lea.sflag [#allocation5], %s507
        %s509 = sand.u32 %s89, 1
        %s510 = smul.addr %s509, 3
        %s511 = scalar_lea.vmem [#allocation6], %s510
        %p512 = pneg %p102
        %p513 = pneg %p99
        %s514 = sand.u32 %s29, 1
        %s515 = scalar_lea.sflag [#allocation8], %s514
        %s516 = sand.u32 %s115, 1
        %s517 = smul.addr %s516, 384
        %s518 = scalar_lea.vmem [#allocation7], %s517
        %p519 = pneg %p128
        %p520 = pneg %p125
        %s521 = sand.u32 %s29, 1
        %s522 = scalar_lea.sflag [#allocation8], %s521
        %s523 = sand.u32 %s141, 1
        %s524 = smul.addr %s523, 3
        %s525 = scalar_lea.vmem [#allocation9], %s524
        %p526 = pneg %p154
        %p527 = pneg %p151
        %p528 = scmp.lt.s32.totalorder %s29, 1
        %s529 = scalar_select %p528, %s29, 1
        %s530 = smul.addr %s529, 64
        %s531 = smul.addr %s530, 8
        %s532 = scalar_lea.vmem %s5, %s531
        %p533 = pneg %p180
        %p534 = pneg %p177
        %p535 = scmp.lt.s32.totalorder %s29, 1
        %s536 = scalar_select %p535, %s29, 1
        %s537 = smul.addr %s536, 4
        %s538 = scalar_lea.vmem %s6, %s537
        %p539 = pneg %p206
        %p540 = pneg %p203
        %p541 = scmp.lt.s32.totalorder %s29, 1
        %s542 = scalar_select %p541, %s29, 1
        %s543 = smul.addr %s542, 64
        %s544 = smul.addr %s543, 8
        %s545 = scalar_lea.vmem %s7, %s544
        %p546 = pneg %p232
        %p547 = pneg %p229
        %p548 = scmp.lt.s32.totalorder %s29, 1
        %s549 = scalar_select %p548, %s29, 1
        %s550 = scalar_lea.vmem %s8, %s549
        %p551 = pneg %p258
        %p552 = pneg %p255
        %p553 = pneg %p284
        %p554 = pneg %p281
        %p555 = scmp.lt.s32.totalorder %s29, 1
        %s556 = scalar_select %p555, %s29, 1
        %s557 = smul.addr %s556, 2
        %s558 = smul.addr %s557, 8
        %s559 = scalar_lea.vmem %s9, %s558
        %p560 = scmp.lt.s32.totalorder %s29, 1
        %s561 = scalar_select %p560, %s29, 1
        %s562 = smul.addr %s561, 64
        %s563 = smul.addr %s562, 8
        %s564 = scalar_lea.vmem %s5, %s563
        %p565 = scmp.lt.s32.totalorder %s29, 1
        %s566 = scalar_select %p565, %s29, 1
        %s567 = smul.addr %s566, 4
        %s568 = scalar_lea.vmem %s6, %s567
        %p569 = scmp.lt.s32.totalorder %s29, 1
        %s570 = scalar_select %p569, %s29, 1
        %s571 = smul.addr %s570, 64
        %s572 = smul.addr %s571, 8
        %s573 = scalar_lea.vmem %s7, %s572
        %p574 = scmp.lt.s32.totalorder %s29, 1
        %s575 = scalar_select %p574, %s29, 1
        %s576 = scalar_lea.vmem %s8, %s575
        %p577 = scmp.lt.s32.totalorder %s29, 1
        %s578 = scalar_select %p577, %s29, 1
        %s579 = smul.addr %s578, 2
        %s580 = smul.addr %s579, 8
        %s581 = scalar_lea.vmem %s9, %s580
        %v582 = vld [vmem:[%s447] sm:$0xff]
        %v583 = vld [vmem:[%s447 + $0x8] sm:$0xff]
        %v584 = vld [vmem:[%s457] sm:$0xff]
        %v585 = vld [vmem:[%s457 + $0x8] sm:$0xff]
        %v586 = vld [vmem:[%s457 + $0x10] sm:$0xff]
        %v587 = vld [vmem:[%s457 + $0x18] sm:$0xff]
        %v588 = vld [vmem:[%s457 + $0x20] sm:$0xff]
        %v589 = vld [vmem:[%s457 + $0x28] sm:$0xff]
        %v590 = vld [vmem:[%s457 + $0x30] sm:$0xff]
        %v591 = vld [vmem:[%s457 + $0x38] sm:$0xff]
        %v592 = vld [vmem:[%s457 + $0x40] sm:$0xff]
        %v593 = vld [vmem:[%s457 + $0x48] sm:$0xff]
        %v594 = vld [vmem:[%s457 + $0x50] sm:$0xff]
        %v595 = vld [vmem:[%s457 + $0x58] sm:$0xff]
        %v596 = vld [vmem:[%s457 + $0x60] sm:$0xff]
        %v597 = vld [vmem:[%s457 + $0x68] sm:$0xff]
        %v598 = vld [vmem:[%s457 + $0x70] sm:$0xff]
        %v599 = vld [vmem:[%s457 + $0x78] sm:$0xff]
        %v600 = vld [vmem:[%s457 + $0x80] sm:$0xff]
        %v601 = vld [vmem:[%s457 + $0x88] sm:$0xff]
        %v602 = vld [vmem:[%s457 + $0x90] sm:$0xff]
        %v603 = vld [vmem:[%s457 + $0x98] sm:$0xff]
        %v604 = vld [vmem:[%s457 + $0xa0] sm:$0xff]
        %v605 = vld [vmem:[%s457 + $0xa8] sm:$0xff]
        %v606 = vld [vmem:[%s457 + $0xb0] sm:$0xff]
        %v607 = vld [vmem:[%s457 + $0xb8] sm:$0xff]
        %v608 = vld [vmem:[%s457 + $0xc0] sm:$0xff]
        %v609 = vld [vmem:[%s457 + $0xc8] sm:$0xff]
        %v610 = vld [vmem:[%s457 + $0xd0] sm:$0xff]
        %v611 = vld [vmem:[%s457 + $0xd8] sm:$0xff]
        %v612 = vld [vmem:[%s457 + $0xe0] sm:$0xff]
        %v613 = vld [vmem:[%s457 + $0xe8] sm:$0xff]
        %v614 = vld [vmem:[%s457 + $0xf0] sm:$0xff]
        %v615 = vld [vmem:[%s457 + $0xf8] sm:$0xff]
        %v616 = vld [vmem:[%s457 + $0x100] sm:$0xff]
        %v617 = vld [vmem:[%s457 + $0x108] sm:$0xff]
        %v618 = vld [vmem:[%s457 + $0x110] sm:$0xff]
        %v619 = vld [vmem:[%s457 + $0x118] sm:$0xff]
        %v620 = vld [vmem:[%s457 + $0x120] sm:$0xff]
        %v621 = vld [vmem:[%s457 + $0x128] sm:$0xff]
        %v622 = vld [vmem:[%s457 + $0x130] sm:$0xff]
        %v623 = vld [vmem:[%s457 + $0x138] sm:$0xff]
        %v624 = vld [vmem:[%s457 + $0x140] sm:$0xff]
        %v625 = vld [vmem:[%s457 + $0x148] sm:$0xff]
        %v626 = vld [vmem:[%s457 + $0x150] sm:$0xff]
        %v627 = vld [vmem:[%s457 + $0x158] sm:$0xff]
        %v628 = vld [vmem:[%s457 + $0x160] sm:$0xff]
        %v629 = vld [vmem:[%s457 + $0x168] sm:$0xff]
        %v630 = vld [vmem:[%s457 + $0x170] sm:$0xff]
        %v631 = vld [vmem:[%s457 + $0x178] sm:$0xff]
        %v632 = vld [vmem:[%s467] sm:$0x7]
        %v634 = vperm.slane %v632, 0
        %v635 = vperm.slane %v632, 1
        %v636 = vperm.slane %v632, 2
        %640 = vmatpush.msra.mxu0 %v629
        %641 = vmatpush.msra.mxu0 %v626
        %642 = vmatpush.msra.mxu0 %v623
        %643 = vmatpush.msra.mxu0 %v620
        %644 = vmatpush.msra.mxu0 %v617
        %645 = vmatpush.msra.mxu0 %v614
        %646 = vmatpush.msra.mxu0 %v611
        %647 = vmatpush.msra.mxu0 %v608
        %648 = vmatpush.msra.mxu0 %v605
        %649 = vmatpush.msra.mxu0 %v602
        %650 = vmatpush.msra.mxu0 %v599
        %651 = vmatpush.msra.mxu0 %v596
        %652 = vmatpush.msra.mxu0 %v593
        %653 = vmatpush.msra.mxu0 %v590
        %654 = vmatpush.msra.mxu0 %v587
        %655 = vmatpush.msra.mxu0 %v584
        %656 = vmatmul.f32.gmra.mxu0 %v582
        %v657 = vpop.f32.mrf.mxu0
        %v658 = vadd.f32 %v634, %v657
        %659 = vmatmul.f32.gmra.mxu0 %v583
        %v660 = vpop.f32.mrf.mxu0
        %v661 = vadd.f32 %v634, %v660
        %662 = vdwg.mxu0
        %663 = vmatpush.msra.mxu0 %v630
        %664 = vmatpush.msra.mxu0 %v627
        %665 = vmatpush.msra.mxu0 %v624
        %666 = vmatpush.msra.mxu0 %v621
        %667 = vmatpush.msra.mxu0 %v618
        %668 = vmatpush.msra.mxu0 %v615
        %669 = vmatpush.msra.mxu0 %v612
        %670 = vmatpush.msra.mxu0 %v609
        %671 = vmatpush.msra.mxu0 %v606
        %672 = vmatpush.msra.mxu0 %v603
        %673 = vmatpush.msra.mxu0 %v600
        %674 = vmatpush.msra.mxu0 %v597
        %675 = vmatpush.msra.mxu0 %v594
        %676 = vmatpush.msra.mxu0 %v591
        %677 = vmatpush.msra.mxu0 %v588
        %678 = vmatpush.msra.mxu0 %v585
        %679 = vmatmul.f32.gmra.mxu0 %v582
        %v680 = vpop.f32.mrf.mxu0
        %v681 = vadd.f32 %v635, %v680
        %682 = vmatmul.f32.gmra.mxu0 %v583
        %v683 = vpop.f32.mrf.mxu0
        %v684 = vadd.f32 %v635, %v683
        %685 = vdwg.mxu0
        %686 = vmatpush.msra.mxu0 %v631
        %687 = vmatpush.msra.mxu0 %v628
        %688 = vmatpush.msra.mxu0 %v625
        %689 = vmatpush.msra.mxu0 %v622
        %690 = vmatpush.msra.mxu0 %v619
        %691 = vmatpush.msra.mxu0 %v616
        %692 = vmatpush.msra.mxu0 %v613
        %693 = vmatpush.msra.mxu0 %v610
        %694 = vmatpush.msra.mxu0 %v607
        %695 = vmatpush.msra.mxu0 %v604
        %696 = vmatpush.msra.mxu0 %v601
        %697 = vmatpush.msra.mxu0 %v598
        %698 = vmatpush.msra.mxu0 %v595
        %699 = vmatpush.msra.mxu0 %v592
        %700 = vmatpush.msra.mxu0 %v589
        %701 = vmatpush.msra.mxu0 %v586
        %702 = vmatmul.f32.gmra.mxu0 %v582
        %v703 = vpop.f32.mrf.mxu0
        %v704 = vadd.f32 %v636, %v703
        %705 = vmatmul.f32.gmra.mxu0 %v583
        %v706 = vpop.f32.mrf.mxu0
        %v707 = vadd.f32 %v636, %v706
        %708 = vdwg.mxu0
        %v709 = vld [vmem:[%s477] sm:$0xff]
        %v710 = vld [vmem:[%s477 + $0x8] sm:$0xff]
        %v711 = vld [vmem:[%s477 + $0x10] sm:$0xff]
        %v712 = vld [vmem:[%s477 + $0x18] sm:$0xff]
        %v713 = vld [vmem:[%s477 + $0x20] sm:$0xff]
        %v714 = vld [vmem:[%s477 + $0x28] sm:$0xff]
        %v715 = vld [vmem:[%s477 + $0x30] sm:$0xff]
        %v716 = vld [vmem:[%s477 + $0x38] sm:$0xff]
        %v717 = vld [vmem:[%s477 + $0x40] sm:$0xff]
        %v718 = vld [vmem:[%s477 + $0x48] sm:$0xff]
        %v719 = vld [vmem:[%s477 + $0x50] sm:$0xff]
        %v720 = vld [vmem:[%s477 + $0x58] sm:$0xff]
        %v721 = vld [vmem:[%s477 + $0x60] sm:$0xff]
        %v722 = vld [vmem:[%s477 + $0x68] sm:$0xff]
        %v723 = vld [vmem:[%s477 + $0x70] sm:$0xff]
        %v724 = vld [vmem:[%s477 + $0x78] sm:$0xff]
        %v725 = vld [vmem:[%s477 + $0x80] sm:$0xff]
        %v726 = vld [vmem:[%s477 + $0x88] sm:$0xff]
        %v727 = vld [vmem:[%s477 + $0x90] sm:$0xff]
        %v728 = vld [vmem:[%s477 + $0x98] sm:$0xff]
        %v729 = vld [vmem:[%s477 + $0xa0] sm:$0xff]
        %v730 = vld [vmem:[%s477 + $0xa8] sm:$0xff]
        %v731 = vld [vmem:[%s477 + $0xb0] sm:$0xff]
        %v732 = vld [vmem:[%s477 + $0xb8] sm:$0xff]
        %v733 = vld [vmem:[%s477 + $0xc0] sm:$0xff]
        %v734 = vld [vmem:[%s477 + $0xc8] sm:$0xff]
        %v735 = vld [vmem:[%s477 + $0xd0] sm:$0xff]
        %v736 = vld [vmem:[%s477 + $0xd8] sm:$0xff]
        %v737 = vld [vmem:[%s477 + $0xe0] sm:$0xff]
        %v738 = vld [vmem:[%s477 + $0xe8] sm:$0xff]
        %v739 = vld [vmem:[%s477 + $0xf0] sm:$0xff]
        %v740 = vld [vmem:[%s477 + $0xf8] sm:$0xff]
        %v741 = vld [vmem:[%s477 + $0x100] sm:$0xff]
        %v742 = vld [vmem:[%s477 + $0x108] sm:$0xff]
        %v743 = vld [vmem:[%s477 + $0x110] sm:$0xff]
        %v744 = vld [vmem:[%s477 + $0x118] sm:$0xff]
        %v745 = vld [vmem:[%s477 + $0x120] sm:$0xff]
        %v746 = vld [vmem:[%s477 + $0x128] sm:$0xff]
        %v747 = vld [vmem:[%s477 + $0x130] sm:$0xff]
        %v748 = vld [vmem:[%s477 + $0x138] sm:$0xff]
        %v749 = vld [vmem:[%s477 + $0x140] sm:$0xff]
        %v750 = vld [vmem:[%s477 + $0x148] sm:$0xff]
        %v751 = vld [vmem:[%s477 + $0x150] sm:$0xff]
        %v752 = vld [vmem:[%s477 + $0x158] sm:$0xff]
        %v753 = vld [vmem:[%s477 + $0x160] sm:$0xff]
        %v754 = vld [vmem:[%s477 + $0x168] sm:$0xff]
        %v755 = vld [vmem:[%s477 + $0x170] sm:$0xff]
        %v756 = vld [vmem:[%s477 + $0x178] sm:$0xff]
        %v757 = vld [vmem:[%s487] sm:$0x7]
        %v759 = vperm.slane %v757, 0
        %v760 = vperm.slane %v757, 1
        %v761 = vperm.slane %v757, 2
        %765 = vmatpush.msra.mxu0 %v754
        %766 = vmatpush.msra.mxu0 %v751
        %767 = vmatpush.msra.mxu0 %v748
        %768 = vmatpush.msra.mxu0 %v745
        %769 = vmatpush.msra.mxu0 %v742
        %770 = vmatpush.msra.mxu0 %v739
        %771 = vmatpush.msra.mxu0 %v736
        %772 = vmatpush.msra.mxu0 %v733
        %773 = vmatpush.msra.mxu0 %v730
        %774 = vmatpush.msra.mxu0 %v727
        %775 = vmatpush.msra.mxu0 %v724
        %776 = vmatpush.msra.mxu0 %v721
        %777 = vmatpush.msra.mxu0 %v718
        %778 = vmatpush.msra.mxu0 %v715
        %779 = vmatpush.msra.mxu0 %v712
        %780 = vmatpush.msra.mxu0 %v709
        %781 = vmatmul.f32.gmra.mxu0 0.0
        %v782 = vpop.f32.mrf.mxu0
        %v783 = vadd.f32 %v759, %v782
        %784 = vdwg.mxu0
        %785 = vmatpush.msra.mxu0 %v755
        %786 = vmatpush.msra.mxu0 %v752
        %787 = vmatpush.msra.mxu0 %v749
        %788 = vmatpush.msra.mxu0 %v746
        %789 = vmatpush.msra.mxu0 %v743
        %790 = vmatpush.msra.mxu0 %v740
        %791 = vmatpush.msra.mxu0 %v737
        %792 = vmatpush.msra.mxu0 %v734
        %793 = vmatpush.msra.mxu0 %v731
        %794 = vmatpush.msra.mxu0 %v728
        %795 = vmatpush.msra.mxu0 %v725
        %796 = vmatpush.msra.mxu0 %v722
        %797 = vmatpush.msra.mxu0 %v719
        %798 = vmatpush.msra.mxu0 %v716
        %799 = vmatpush.msra.mxu0 %v713
        %800 = vmatpush.msra.mxu0 %v710
        %801 = vmatmul.f32.gmra.mxu0 0.0
        %v802 = vpop.f32.mrf.mxu0
        %v803 = vadd.f32 %v760, %v802
        %804 = vdwg.mxu0
        %805 = vmatpush.msra.mxu0 %v756
        %806 = vmatpush.msra.mxu0 %v753
        %807 = vmatpush.msra.mxu0 %v750
        %808 = vmatpush.msra.mxu0 %v747
        %809 = vmatpush.msra.mxu0 %v744
        %810 = vmatpush.msra.mxu0 %v741
        %811 = vmatpush.msra.mxu0 %v738
        %812 = vmatpush.msra.mxu0 %v735
        %813 = vmatpush.msra.mxu0 %v732
        %814 = vmatpush.msra.mxu0 %v729
        %815 = vmatpush.msra.mxu0 %v726
        %816 = vmatpush.msra.mxu0 %v723
        %817 = vmatpush.msra.mxu0 %v720
        %818 = vmatpush.msra.mxu0 %v717
        %819 = vmatpush.msra.mxu0 %v714
        %820 = vmatpush.msra.mxu0 %v711
        %821 = vmatmul.f32.gmra.mxu0 0.0
        %v822 = vpop.f32.mrf.mxu0
        %v823 = vadd.f32 %v761, %v822
        %824 = vdwg.mxu0
        %v825 = vadd.f32 %v658, %v783
        %v826 = vxor.u32 %v825, 2147483648
        %v827 = vmul.f32 %v826, 1.442695
        %v828 = vpow.pop %v827
        %v829 = vadd.f32 %v828, 1.0
        %v830 = vrcp.pop %v829
        %v831 = vmul.f32 %v829, %v830
        %v832 = vsub.f32 1.0, %v831
        %v833 = vmul.f32 %v830, %v832
        %v834 = vadd.f32 %v830, %v833
        %vm835 = vweird.f32 %v829
        %vm836 = vweird.f32 %v830
        %vm837 = vmor %vm835, %vm836
        %v838 = vsel %vm837, %v830, %v834
        %v839 = vand.u32 2147483647, %v829
        %vm840 = vcmp.eq.f32.partialorder %v839, 8.507059e+37
        %v841 = vand.u32 %v829, 2147483648
        %v842 = vor.u32 1.1754944e-38, %v841
        %v843 = vsel %vm840, %v842, %v838
        %v844 = vmul.f32 1.0, %v843
        %v845 = vadd.f32 %v681, %v803
        %v846 = vxor.u32 %v845, 2147483648
        %v847 = vmul.f32 %v846, 1.442695
        %v848 = vpow.pop %v847
        %v849 = vadd.f32 %v848, 1.0
        %v850 = vrcp.pop %v849
        %v851 = vmul.f32 %v849, %v850
        %v852 = vsub.f32 1.0, %v851
        %v853 = vmul.f32 %v850, %v852
        %v854 = vadd.f32 %v850, %v853
        %vm855 = vweird.f32 %v849
        %vm856 = vweird.f32 %v850
        %vm857 = vmor %vm855, %vm856
        %v858 = vsel %vm857, %v850, %v854
        %v859 = vand.u32 2147483647, %v849
        %vm860 = vcmp.eq.f32.partialorder %v859, 8.507059e+37
        %v861 = vand.u32 %v849, 2147483648
        %v862 = vor.u32 1.1754944e-38, %v861
        %v863 = vsel %vm860, %v862, %v858
        %v864 = vmul.f32 1.0, %v863
        %v865 = vmul.f32 %v844, %v823
        %v866 = vadd.f32 %v704, %v865
        %v867 = vtanh.pop %v866
        %v868 = vsub.f32 1.0, %v864
        %v869 = vmul.f32 %v868, %v867
        %v870 = vmul.f32 %v864, 0.0
        %v871 = vadd.f32 %v869, %v870
        %872 = vmatpush.msra.mxu0 %v754
        %873 = vmatpush.msra.mxu0 %v751
        %874 = vmatpush.msra.mxu0 %v748
        %875 = vmatpush.msra.mxu0 %v745
        %876 = vmatpush.msra.mxu0 %v742
        %877 = vmatpush.msra.mxu0 %v739
        %878 = vmatpush.msra.mxu0 %v736
        %879 = vmatpush.msra.mxu0 %v733
        %880 = vmatpush.msra.mxu0 %v730
        %881 = vmatpush.msra.mxu0 %v727
        %882 = vmatpush.msra.mxu0 %v724
        %883 = vmatpush.msra.mxu0 %v721
        %884 = vmatpush.msra.mxu0 %v718
        %885 = vmatpush.msra.mxu0 %v715
        %886 = vmatpush.msra.mxu0 %v712
        %887 = vmatpush.msra.mxu0 %v709
        %888 = vmatmul.f32.gmra.mxu0 %v871
        %v889 = vpop.f32.mrf.mxu0
        %v890 = vadd.f32 %v759, %v889
        %891 = vdwg.mxu0
        %892 = vmatpush.msra.mxu0 %v755
        %893 = vmatpush.msra.mxu0 %v752
        %894 = vmatpush.msra.mxu0 %v749
        %895 = vmatpush.msra.mxu0 %v746
        %896 = vmatpush.msra.mxu0 %v743
        %897 = vmatpush.msra.mxu0 %v740
        %898 = vmatpush.msra.mxu0 %v737
        %899 = vmatpush.msra.mxu0 %v734
        %900 = vmatpush.msra.mxu0 %v731
        %901 = vmatpush.msra.mxu0 %v728
        %902 = vmatpush.msra.mxu0 %v725
        %903 = vmatpush.msra.mxu0 %v722
        %904 = vmatpush.msra.mxu0 %v719
        %905 = vmatpush.msra.mxu0 %v716
        %906 = vmatpush.msra.mxu0 %v713
        %907 = vmatpush.msra.mxu0 %v710
        %908 = vmatmul.f32.gmra.mxu0 %v871
        %v909 = vpop.f32.mrf.mxu0
        %v910 = vadd.f32 %v760, %v909
        %911 = vdwg.mxu0
        %912 = vmatpush.msra.mxu0 %v756
        %913 = vmatpush.msra.mxu0 %v753
        %914 = vmatpush.msra.mxu0 %v750
        %915 = vmatpush.msra.mxu0 %v747
        %916 = vmatpush.msra.mxu0 %v744
        %917 = vmatpush.msra.mxu0 %v741
        %918 = vmatpush.msra.mxu0 %v738
        %919 = vmatpush.msra.mxu0 %v735
        %920 = vmatpush.msra.mxu0 %v732
        %921 = vmatpush.msra.mxu0 %v729
        %922 = vmatpush.msra.mxu0 %v726
        %923 = vmatpush.msra.mxu0 %v723
        %924 = vmatpush.msra.mxu0 %v720
        %925 = vmatpush.msra.mxu0 %v717
        %926 = vmatpush.msra.mxu0 %v714
        %927 = vmatpush.msra.mxu0 %v711
        %928 = vmatmul.f32.gmra.mxu0 %v871
        %v929 = vpop.f32.mrf.mxu0
        %v930 = vadd.f32 %v761, %v929
        %931 = vdwg.mxu0
        %v933 = vrot.slane %v890, 6
        %v935 = vadd.f32 %v658, %v933
        %v936 = vxor.u32 %v935, 2147483648
        %v937 = vmul.f32 %v936, 1.442695
        %v938 = vpow.pop %v937
        %v939 = vadd.f32 %v938, 1.0
        %v940 = vrcp.pop %v939
        %v941 = vmul.f32 %v939, %v940
        %v942 = vsub.f32 1.0, %v941
        %v943 = vmul.f32 %v940, %v942
        %v944 = vadd.f32 %v940, %v943
        %vm945 = vweird.f32 %v939
        %vm946 = vweird.f32 %v940
        %vm947 = vmor %vm945, %vm946
        %v948 = vsel %vm947, %v940, %v944
        %v949 = vand.u32 2147483647, %v939
        %vm950 = vcmp.eq.f32.partialorder %v949, 8.507059e+37
        %v951 = vand.u32 %v939, 2147483648
        %v952 = vor.u32 1.1754944e-38, %v951
        %v953 = vsel %vm950, %v952, %v948
        %v954 = vmul.f32 1.0, %v953
        %v956 = vrot.slane %v910, 6
        %v958 = vadd.f32 %v681, %v956
        %v959 = vxor.u32 %v958, 2147483648
        %v960 = vmul.f32 %v959, 1.442695
        %v961 = vpow.pop %v960
        %v962 = vadd.f32 %v961, 1.0
        %v963 = vrcp.pop %v962
        %v964 = vmul.f32 %v962, %v963
        %v965 = vsub.f32 1.0, %v964
        %v966 = vmul.f32 %v963, %v965
        %v967 = vadd.f32 %v963, %v966
        %vm968 = vweird.f32 %v962
        %vm969 = vweird.f32 %v963
        %vm970 = vmor %vm968, %vm969
        %v971 = vsel %vm970, %v963, %v967
        %v972 = vand.u32 2147483647, %v962
        %vm973 = vcmp.eq.f32.partialorder %v972, 8.507059e+37
        %v974 = vand.u32 %v962, 2147483648
        %v975 = vor.u32 1.1754944e-38, %v974
        %v976 = vsel %vm973, %v975, %v971
        %v977 = vmul.f32 1.0, %v976
        %v979 = vrot.slane %v930, 6
        %v981 = vmul.f32 %v954, %v979
        %v982 = vadd.f32 %v704, %v981
        %v983 = vtanh.pop %v982
        %v984 = vsub.f32 1.0, %v977
        %v985 = vmul.f32 %v984, %v983
        %v987 = vrot.slane %v871, 6
        %v989 = vmul.f32 %v977, %v987
        %v990 = vadd.f32 %v985, %v989
        %v992 = vrot.slane %v990, 2
        %994 = vmatpush.msra.mxu0 %v754
        %995 = vmatpush.msra.mxu0 %v751
        %996 = vmatpush.msra.mxu0 %v748
        %997 = vmatpush.msra.mxu0 %v745
        %998 = vmatpush.msra.mxu0 %v742
        %999 = vmatpush.msra.mxu0 %v739
        %1000 = vmatpush.msra.mxu0 %v736
        %1001 = vmatpush.msra.mxu0 %v733
        %1002 = vmatpush.msra.mxu0 %v730
        %1003 = vmatpush.msra.mxu0 %v727
        %1004 = vmatpush.msra.mxu0 %v724
        %1005 = vmatpush.msra.mxu0 %v721
        %1006 = vmatpush.msra.mxu0 %v718
        %1007 = vmatpush.msra.mxu0 %v715
        %1008 = vmatpush.msra.mxu0 %v712
        %1009 = vmatpush.msra.mxu0 %v709
        %1010 = vmatmul.f32.gmra.mxu0 %v992
        %v1011 = vpop.f32.mrf.mxu0
        %v1012 = vadd.f32 %v759, %v1011
        %1013 = vdwg.mxu0
        %1014 = vmatpush.msra.mxu0 %v755
        %1015 = vmatpush.msra.mxu0 %v752
        %1016 = vmatpush.msra.mxu0 %v749
        %1017 = vmatpush.msra.mxu0 %v746
        %1018 = vmatpush.msra.mxu0 %v743
        %1019 = vmatpush.msra.mxu0 %v740
        %1020 = vmatpush.msra.mxu0 %v737
        %1021 = vmatpush.msra.mxu0 %v734
        %1022 = vmatpush.msra.mxu0 %v731
        %1023 = vmatpush.msra.mxu0 %v728
        %1024 = vmatpush.msra.mxu0 %v725
        %1025 = vmatpush.msra.mxu0 %v722
        %1026 = vmatpush.msra.mxu0 %v719
        %1027 = vmatpush.msra.mxu0 %v716
        %1028 = vmatpush.msra.mxu0 %v713
        %1029 = vmatpush.msra.mxu0 %v710
        %1030 = vmatmul.f32.gmra.mxu0 %v992
        %v1031 = vpop.f32.mrf.mxu0
        %v1032 = vadd.f32 %v760, %v1031
        %1033 = vdwg.mxu0
        %1034 = vmatpush.msra.mxu0 %v756
        %1035 = vmatpush.msra.mxu0 %v753
        %1036 = vmatpush.msra.mxu0 %v750
        %1037 = vmatpush.msra.mxu0 %v747
        %1038 = vmatpush.msra.mxu0 %v744
        %1039 = vmatpush.msra.mxu0 %v741
        %1040 = vmatpush.msra.mxu0 %v738
        %1041 = vmatpush.msra.mxu0 %v735
        %1042 = vmatpush.msra.mxu0 %v732
        %1043 = vmatpush.msra.mxu0 %v729
        %1044 = vmatpush.msra.mxu0 %v726
        %1045 = vmatpush.msra.mxu0 %v723
        %1046 = vmatpush.msra.mxu0 %v720
        %1047 = vmatpush.msra.mxu0 %v717
        %1048 = vmatpush.msra.mxu0 %v714
        %1049 = vmatpush.msra.mxu0 %v711
        %1050 = vmatmul.f32.gmra.mxu0 %v992
        %v1051 = vpop.f32.mrf.mxu0
        %v1052 = vadd.f32 %v761, %v1051
        %1053 = vdwg.mxu0
        %v1055 = vrot.slane %v1012, 4
        %v1057 = vadd.f32 %v658, %v1055
        %v1058 = vxor.u32 %v1057, 2147483648
        %v1059 = vmul.f32 %v1058, 1.442695
        %v1060 = vpow.pop %v1059
        %v1061 = vadd.f32 %v1060, 1.0
        %v1062 = vrcp.pop %v1061
        %v1063 = vmul.f32 %v1061, %v1062
        %v1064 = vsub.f32 1.0, %v1063
        %v1065 = vmul.f32 %v1062, %v1064
        %v1066 = vadd.f32 %v1062, %v1065
        %vm1067 = vweird.f32 %v1061
        %vm1068 = vweird.f32 %v1062
        %vm1069 = vmor %vm1067, %vm1068
        %v1070 = vsel %vm1069, %v1062, %v1066
        %v1071 = vand.u32 2147483647, %v1061
        %vm1072 = vcmp.eq.f32.partialorder %v1071, 8.507059e+37
        %v1073 = vand.u32 %v1061, 2147483648
        %v1074 = vor.u32 1.1754944e-38, %v1073
        %v1075 = vsel %vm1072, %v1074, %v1070
        %v1076 = vmul.f32 1.0, %v1075
        %v1078 = vrot.slane %v1032, 4
        %v1080 = vadd.f32 %v681, %v1078
        %v1081 = vxor.u32 %v1080, 2147483648
        %v1082 = vmul.f32 %v1081, 1.442695
        %v1083 = vpow.pop %v1082
        %v1084 = vadd.f32 %v1083, 1.0
        %v1085 = vrcp.pop %v1084
        %v1086 = vmul.f32 %v1084, %v1085
        %v1087 = vsub.f32 1.0, %v1086
        %v1088 = vmul.f32 %v1085, %v1087
        %v1089 = vadd.f32 %v1085, %v1088
        %vm1090 = vweird.f32 %v1084
        %vm1091 = vweird.f32 %v1085
        %vm1092 = vmor %vm1090, %vm1091
        %v1093 = vsel %vm1092, %v1085, %v1089
        %v1094 = vand.u32 2147483647, %v1084
        %vm1095 = vcmp.eq.f32.partialorder %v1094, 8.507059e+37
        %v1096 = vand.u32 %v1084, 2147483648
        %v1097 = vor.u32 1.1754944e-38, %v1096
        %v1098 = vsel %vm1095, %v1097, %v1093
        %v1099 = vmul.f32 1.0, %v1098
        %v1101 = vrot.slane %v1052, 4
        %v1103 = vmul.f32 %v1076, %v1101
        %v1104 = vadd.f32 %v704, %v1103
        %v1105 = vtanh.pop %v1104
        %v1106 = vsub.f32 1.0, %v1099
        %v1107 = vmul.f32 %v1106, %v1105
        %v1108 = vrot.slane %v990, 6
        %v1110 = vmul.f32 %v1099, %v1108
        %v1111 = vadd.f32 %v1107, %v1110
        %v1113 = vrot.slane %v1111, 4
        %1115 = vmatpush.msra.mxu0 %v754
        %1116 = vmatpush.msra.mxu0 %v751
        %1117 = vmatpush.msra.mxu0 %v748
        %1118 = vmatpush.msra.mxu0 %v745
        %1119 = vmatpush.msra.mxu0 %v742
        %1120 = vmatpush.msra.mxu0 %v739
        %1121 = vmatpush.msra.mxu0 %v736
        %1122 = vmatpush.msra.mxu0 %v733
        %1123 = vmatpush.msra.mxu0 %v730
        %1124 = vmatpush.msra.mxu0 %v727
        %1125 = vmatpush.msra.mxu0 %v724
        %1126 = vmatpush.msra.mxu0 %v721
        %1127 = vmatpush.msra.mxu0 %v718
        %1128 = vmatpush.msra.mxu0 %v715
        %1129 = vmatpush.msra.mxu0 %v712
        %1130 = vmatpush.msra.mxu0 %v709
        %1131 = vmatmul.f32.gmra.mxu0 %v1113
        %v1132 = vpop.f32.mrf.mxu0
        %v1133 = vadd.f32 %v759, %v1132
        %1134 = vdwg.mxu0
        %1135 = vmatpush.msra.mxu0 %v755
        %1136 = vmatpush.msra.mxu0 %v752
        %1137 = vmatpush.msra.mxu0 %v749
        %1138 = vmatpush.msra.mxu0 %v746
        %1139 = vmatpush.msra.mxu0 %v743
        %1140 = vmatpush.msra.mxu0 %v740
        %1141 = vmatpush.msra.mxu0 %v737
        %1142 = vmatpush.msra.mxu0 %v734
        %1143 = vmatpush.msra.mxu0 %v731
        %1144 = vmatpush.msra.mxu0 %v728
        %1145 = vmatpush.msra.mxu0 %v725
        %1146 = vmatpush.msra.mxu0 %v722
        %1147 = vmatpush.msra.mxu0 %v719
        %1148 = vmatpush.msra.mxu0 %v716
        %1149 = vmatpush.msra.mxu0 %v713
        %1150 = vmatpush.msra.mxu0 %v710
        %1151 = vmatmul.f32.gmra.mxu0 %v1113
        %v1152 = vpop.f32.mrf.mxu0
        %v1153 = vadd.f32 %v760, %v1152
        %1154 = vdwg.mxu0
        %1155 = vmatpush.msra.mxu0 %v756
        %1156 = vmatpush.msra.mxu0 %v753
        %1157 = vmatpush.msra.mxu0 %v750
        %1158 = vmatpush.msra.mxu0 %v747
        %1159 = vmatpush.msra.mxu0 %v744
        %1160 = vmatpush.msra.mxu0 %v741
        %1161 = vmatpush.msra.mxu0 %v738
        %1162 = vmatpush.msra.mxu0 %v735
        %1163 = vmatpush.msra.mxu0 %v732
        %1164 = vmatpush.msra.mxu0 %v729
        %1165 = vmatpush.msra.mxu0 %v726
        %1166 = vmatpush.msra.mxu0 %v723
        %1167 = vmatpush.msra.mxu0 %v720
        %1168 = vmatpush.msra.mxu0 %v717
        %1169 = vmatpush.msra.mxu0 %v714
        %1170 = vmatpush.msra.mxu0 %v711
        %1171 = vmatmul.f32.gmra.mxu0 %v1113
        %v1172 = vpop.f32.mrf.mxu0
        %v1173 = vadd.f32 %v761, %v1172
        %1174 = vdwg.mxu0
        %v1176 = vrot.slane %v1133, 2
        %v1178 = vadd.f32 %v658, %v1176
        %v1179 = vxor.u32 %v1178, 2147483648
        %v1180 = vmul.f32 %v1179, 1.442695
        %v1181 = vpow.pop %v1180
        %v1182 = vadd.f32 %v1181, 1.0
        %v1183 = vrcp.pop %v1182
        %v1184 = vmul.f32 %v1182, %v1183
        %v1185 = vsub.f32 1.0, %v1184
        %v1186 = vmul.f32 %v1183, %v1185
        %v1187 = vadd.f32 %v1183, %v1186
        %vm1188 = vweird.f32 %v1182
        %vm1189 = vweird.f32 %v1183
        %vm1190 = vmor %vm1188, %vm1189
        %v1191 = vsel %vm1190, %v1183, %v1187
        %v1192 = vand.u32 2147483647, %v1182
        %vm1193 = vcmp.eq.f32.partialorder %v1192, 8.507059e+37
        %v1194 = vand.u32 %v1182, 2147483648
        %v1195 = vor.u32 1.1754944e-38, %v1194
        %v1196 = vsel %vm1193, %v1195, %v1191
        %v1197 = vmul.f32 1.0, %v1196
        %v1199 = vrot.slane %v1153, 2
        %v1201 = vadd.f32 %v681, %v1199
        %v1202 = vxor.u32 %v1201, 2147483648
        %v1203 = vmul.f32 %v1202, 1.442695
        %v1204 = vpow.pop %v1203
        %v1205 = vadd.f32 %v1204, 1.0
        %v1206 = vrcp.pop %v1205
        %v1207 = vmul.f32 %v1205, %v1206
        %v1208 = vsub.f32 1.0, %v1207
        %v1209 = vmul.f32 %v1206, %v1208
        %v1210 = vadd.f32 %v1206, %v1209
        %vm1211 = vweird.f32 %v1205
        %vm1212 = vweird.f32 %v1206
        %vm1213 = vmor %vm1211, %vm1212
        %v1214 = vsel %vm1213, %v1206, %v1210
        %v1215 = vand.u32 2147483647, %v1205
        %vm1216 = vcmp.eq.f32.partialorder %v1215, 8.507059e+37
        %v1217 = vand.u32 %v1205, 2147483648
        %v1218 = vor.u32 1.1754944e-38, %v1217
        %v1219 = vsel %vm1216, %v1218, %v1214
        %v1220 = vmul.f32 1.0, %v1219
        %v1222 = vrot.slane %v1173, 2
        %v1224 = vmul.f32 %v1197, %v1222
        %v1225 = vadd.f32 %v704, %v1224
        %v1226 = vtanh.pop %v1225
        %v1227 = vsub.f32 1.0, %v1220
        %v1228 = vmul.f32 %v1227, %v1226
        %v1229 = vrot.slane %v1111, 6
        %v1231 = vmul.f32 %v1220, %v1229
        %v1232 = vadd.f32 %v1228, %v1231
        %v1234 = vrot.slane %v1232, 6
        %1236 = vmatpush.msra.mxu0 %v754
        %1237 = vmatpush.msra.mxu0 %v751
        %1238 = vmatpush.msra.mxu0 %v748
        %1239 = vmatpush.msra.mxu0 %v745
        %1240 = vmatpush.msra.mxu0 %v742
        %1241 = vmatpush.msra.mxu0 %v739
        %1242 = vmatpush.msra.mxu0 %v736
        %1243 = vmatpush.msra.mxu0 %v733
        %1244 = vmatpush.msra.mxu0 %v730
        %1245 = vmatpush.msra.mxu0 %v727
        %1246 = vmatpush.msra.mxu0 %v724
        %1247 = vmatpush.msra.mxu0 %v721
        %1248 = vmatpush.msra.mxu0 %v718
        %1249 = vmatpush.msra.mxu0 %v715
        %1250 = vmatpush.msra.mxu0 %v712
        %1251 = vmatpush.msra.mxu0 %v709
        %1252 = vmatmul.f32.gmra.mxu0 %v1234
        %v1253 = vpop.f32.mrf.mxu0
        %v1254 = vadd.f32 %v759, %v1253
        %1255 = vdwg.mxu0
        %1256 = vmatpush.msra.mxu0 %v755
        %1257 = vmatpush.msra.mxu0 %v752
        %1258 = vmatpush.msra.mxu0 %v749
        %1259 = vmatpush.msra.mxu0 %v746
        %1260 = vmatpush.msra.mxu0 %v743
        %1261 = vmatpush.msra.mxu0 %v740
        %1262 = vmatpush.msra.mxu0 %v737
        %1263 = vmatpush.msra.mxu0 %v734
        %1264 = vmatpush.msra.mxu0 %v731
        %1265 = vmatpush.msra.mxu0 %v728
        %1266 = vmatpush.msra.mxu0 %v725
        %1267 = vmatpush.msra.mxu0 %v722
        %1268 = vmatpush.msra.mxu0 %v719
        %1269 = vmatpush.msra.mxu0 %v716
        %1270 = vmatpush.msra.mxu0 %v713
        %1271 = vmatpush.msra.mxu0 %v710
        %1272 = vmatmul.f32.gmra.mxu0 %v1234
        %v1273 = vpop.f32.mrf.mxu0
        %v1274 = vadd.f32 %v760, %v1273
        %1275 = vdwg.mxu0
        %1276 = vmatpush.msra.mxu0 %v756
        %1277 = vmatpush.msra.mxu0 %v753
        %1278 = vmatpush.msra.mxu0 %v750
        %1279 = vmatpush.msra.mxu0 %v747
        %1280 = vmatpush.msra.mxu0 %v744
        %1281 = vmatpush.msra.mxu0 %v741
        %1282 = vmatpush.msra.mxu0 %v738
        %1283 = vmatpush.msra.mxu0 %v735
        %1284 = vmatpush.msra.mxu0 %v732
        %1285 = vmatpush.msra.mxu0 %v729
        %1286 = vmatpush.msra.mxu0 %v726
        %1287 = vmatpush.msra.mxu0 %v723
        %1288 = vmatpush.msra.mxu0 %v720
        %1289 = vmatpush.msra.mxu0 %v717
        %1290 = vmatpush.msra.mxu0 %v714
        %1291 = vmatpush.msra.mxu0 %v711
        %1292 = vmatmul.f32.gmra.mxu0 %v1234
        %v1293 = vpop.f32.mrf.mxu0
        %v1294 = vadd.f32 %v761, %v1293
        %1295 = vdwg.mxu0
        %v1296 = vadd.f32 %v661, %v1254
        %v1297 = vxor.u32 %v1296, 2147483648
        %v1298 = vmul.f32 %v1297, 1.442695
        %v1299 = vpow.pop %v1298
        %v1300 = vadd.f32 %v1299, 1.0
        %v1301 = vrcp.pop %v1300
        %v1302 = vmul.f32 %v1300, %v1301
        %v1303 = vsub.f32 1.0, %v1302
        %v1304 = vmul.f32 %v1301, %v1303
        %v1305 = vadd.f32 %v1301, %v1304
        %vm1306 = vweird.f32 %v1300
        %vm1307 = vweird.f32 %v1301
        %vm1308 = vmor %vm1306, %vm1307
        %v1309 = vsel %vm1308, %v1301, %v1305
        %v1310 = vand.u32 2147483647, %v1300
        %vm1311 = vcmp.eq.f32.partialorder %v1310, 8.507059e+37
        %v1312 = vand.u32 %v1300, 2147483648
        %v1313 = vor.u32 1.1754944e-38, %v1312
        %v1314 = vsel %vm1311, %v1313, %v1309
        %v1315 = vmul.f32 1.0, %v1314
        %v1316 = vadd.f32 %v684, %v1274
        %v1317 = vxor.u32 %v1316, 2147483648
        %v1318 = vmul.f32 %v1317, 1.442695
        %v1319 = vpow.pop %v1318
        %v1320 = vadd.f32 %v1319, 1.0
        %v1321 = vrcp.pop %v1320
        %v1322 = vmul.f32 %v1320, %v1321
        %v1323 = vsub.f32 1.0, %v1322
        %v1324 = vmul.f32 %v1321, %v1323
        %v1325 = vadd.f32 %v1321, %v1324
        %vm1326 = vweird.f32 %v1320
        %vm1327 = vweird.f32 %v1321
        %vm1328 = vmor %vm1326, %vm1327
        %v1329 = vsel %vm1328, %v1321, %v1325
        %v1330 = vand.u32 2147483647, %v1320
        %vm1331 = vcmp.eq.f32.partialorder %v1330, 8.507059e+37
        %v1332 = vand.u32 %v1320, 2147483648
        %v1333 = vor.u32 1.1754944e-38, %v1332
        %v1334 = vsel %vm1331, %v1333, %v1329
        %v1335 = vmul.f32 1.0, %v1334
        %v1336 = vmul.f32 %v1315, %v1294
        %v1337 = vadd.f32 %v707, %v1336
        %v1338 = vtanh.pop %v1337
        %v1339 = vsub.f32 1.0, %v1335
        %v1340 = vmul.f32 %v1339, %v1338
        %v1341 = vmul.f32 %v1335, %v1234
        %v1342 = vadd.f32 %v1340, %v1341
        %1343 = vmatpush.msra.mxu0 %v754
        %1344 = vmatpush.msra.mxu0 %v751
        %1345 = vmatpush.msra.mxu0 %v748
        %1346 = vmatpush.msra.mxu0 %v745
        %1347 = vmatpush.msra.mxu0 %v742
        %1348 = vmatpush.msra.mxu0 %v739
        %1349 = vmatpush.msra.mxu0 %v736
        %1350 = vmatpush.msra.mxu0 %v733
        %1351 = vmatpush.msra.mxu0 %v730
        %1352 = vmatpush.msra.mxu0 %v727
        %1353 = vmatpush.msra.mxu0 %v724
        %1354 = vmatpush.msra.mxu0 %v721
        %1355 = vmatpush.msra.mxu0 %v718
        %1356 = vmatpush.msra.mxu0 %v715
        %1357 = vmatpush.msra.mxu0 %v712
        %1358 = vmatpush.msra.mxu0 %v709
        %1359 = vmatmul.f32.gmra.mxu0 %v1342
        %v1360 = vpop.f32.mrf.mxu0
        %v1361 = vadd.f32 %v759, %v1360
        %1362 = vdwg.mxu0
        %1363 = vmatpush.msra.mxu0 %v755
        %1364 = vmatpush.msra.mxu0 %v752
        %1365 = vmatpush.msra.mxu0 %v749
        %1366 = vmatpush.msra.mxu0 %v746
        %1367 = vmatpush.msra.mxu0 %v743
        %1368 = vmatpush.msra.mxu0 %v740
        %1369 = vmatpush.msra.mxu0 %v737
        %1370 = vmatpush.msra.mxu0 %v734
        %1371 = vmatpush.msra.mxu0 %v731
        %1372 = vmatpush.msra.mxu0 %v728
        %1373 = vmatpush.msra.mxu0 %v725
        %1374 = vmatpush.msra.mxu0 %v722
        %1375 = vmatpush.msra.mxu0 %v719
        %1376 = vmatpush.msra.mxu0 %v716
        %1377 = vmatpush.msra.mxu0 %v713
        %1378 = vmatpush.msra.mxu0 %v710
        %1379 = vmatmul.f32.gmra.mxu0 %v1342
        %v1380 = vpop.f32.mrf.mxu0
        %v1381 = vadd.f32 %v760, %v1380
        %1382 = vdwg.mxu0
        %1383 = vmatpush.msra.mxu0 %v756
        %1384 = vmatpush.msra.mxu0 %v753
        %1385 = vmatpush.msra.mxu0 %v750
        %1386 = vmatpush.msra.mxu0 %v747
        %1387 = vmatpush.msra.mxu0 %v744
        %1388 = vmatpush.msra.mxu0 %v741
        %1389 = vmatpush.msra.mxu0 %v738
        %1390 = vmatpush.msra.mxu0 %v735
        %1391 = vmatpush.msra.mxu0 %v732
        %1392 = vmatpush.msra.mxu0 %v729
        %1393 = vmatpush.msra.mxu0 %v726
        %1394 = vmatpush.msra.mxu0 %v723
        %1395 = vmatpush.msra.mxu0 %v720
        %1396 = vmatpush.msra.mxu0 %v717
        %1397 = vmatpush.msra.mxu0 %v714
        %1398 = vmatpush.msra.mxu0 %v711
        %1399 = vmatmul.f32.gmra.mxu0 %v1342
        %v1400 = vpop.f32.mrf.mxu0
        %v1401 = vadd.f32 %v761, %v1400
        %1402 = vdwg.mxu0
        %v1404 = vrot.slane %v1361, 6
        %v1406 = vadd.f32 %v661, %v1404
        %v1407 = vxor.u32 %v1406, 2147483648
        %v1408 = vmul.f32 %v1407, 1.442695
        %v1409 = vpow.pop %v1408
        %v1410 = vadd.f32 %v1409, 1.0
        %v1411 = vrcp.pop %v1410
        %v1412 = vmul.f32 %v1410, %v1411
        %v1413 = vsub.f32 1.0, %v1412
        %v1414 = vmul.f32 %v1411, %v1413
        %v1415 = vadd.f32 %v1411, %v1414
        %vm1416 = vweird.f32 %v1410
        %vm1417 = vweird.f32 %v1411
        %vm1418 = vmor %vm1416, %vm1417
        %v1419 = vsel %vm1418, %v1411, %v1415
        %v1420 = vand.u32 2147483647, %v1410
        %vm1421 = vcmp.eq.f32.partialorder %v1420, 8.507059e+37
        %v1422 = vand.u32 %v1410, 2147483648
        %v1423 = vor.u32 1.1754944e-38, %v1422
        %v1424 = vsel %vm1421, %v1423, %v1419
        %v1425 = vmul.f32 1.0, %v1424
        %v1427 = vrot.slane %v1381, 6
        %v1429 = vadd.f32 %v684, %v1427
        %v1430 = vxor.u32 %v1429, 2147483648
        %v1431 = vmul.f32 %v1430, 1.442695
        %v1432 = vpow.pop %v1431
        %v1433 = vadd.f32 %v1432, 1.0
        %v1434 = vrcp.pop %v1433
        %v1435 = vmul.f32 %v1433, %v1434
        %v1436 = vsub.f32 1.0, %v1435
        %v1437 = vmul.f32 %v1434, %v1436
        %v1438 = vadd.f32 %v1434, %v1437
        %vm1439 = vweird.f32 %v1433
        %vm1440 = vweird.f32 %v1434
        %vm1441 = vmor %vm1439, %vm1440
        %v1442 = vsel %vm1441, %v1434, %v1438
        %v1443 = vand.u32 2147483647, %v1433
        %vm1444 = vcmp.eq.f32.partialorder %v1443, 8.507059e+37
        %v1445 = vand.u32 %v1433, 2147483648
        %v1446 = vor.u32 1.1754944e-38, %v1445
        %v1447 = vsel %vm1444, %v1446, %v1442
        %v1448 = vmul.f32 1.0, %v1447
        %v1450 = vrot.slane %v1401, 6
        %v1452 = vmul.f32 %v1425, %v1450
        %v1453 = vadd.f32 %v707, %v1452
        %v1454 = vtanh.pop %v1453
        %v1455 = vsub.f32 1.0, %v1448
        %v1456 = vmul.f32 %v1455, %v1454
        %v1458 = vrot.slane %v1342, 6
        %v1460 = vmul.f32 %v1448, %v1458
        %v1461 = vadd.f32 %v1456, %v1460
        %v1463 = vrot.slane %v1461, 2
        %1465 = vmatpush.msra.mxu0 %v754
        %1466 = vmatpush.msra.mxu0 %v751
        %1467 = vmatpush.msra.mxu0 %v748
        %1468 = vmatpush.msra.mxu0 %v745
        %1469 = vmatpush.msra.mxu0 %v742
        %1470 = vmatpush.msra.mxu0 %v739
        %1471 = vmatpush.msra.mxu0 %v736
        %1472 = vmatpush.msra.mxu0 %v733
        %1473 = vmatpush.msra.mxu0 %v730
        %1474 = vmatpush.msra.mxu0 %v727
        %1475 = vmatpush.msra.mxu0 %v724
        %1476 = vmatpush.msra.mxu0 %v721
        %1477 = vmatpush.msra.mxu0 %v718
        %1478 = vmatpush.msra.mxu0 %v715
        %1479 = vmatpush.msra.mxu0 %v712
        %1480 = vmatpush.msra.mxu0 %v709
        %1481 = vmatmul.f32.gmra.mxu0 %v1463
        %v1482 = vpop.f32.mrf.mxu0
        %v1483 = vadd.f32 %v759, %v1482
        %1484 = vdwg.mxu0
        %1485 = vmatpush.msra.mxu0 %v755
        %1486 = vmatpush.msra.mxu0 %v752
        %1487 = vmatpush.msra.mxu0 %v749
        %1488 = vmatpush.msra.mxu0 %v746
        %1489 = vmatpush.msra.mxu0 %v743
        %1490 = vmatpush.msra.mxu0 %v740
        %1491 = vmatpush.msra.mxu0 %v737
        %1492 = vmatpush.msra.mxu0 %v734
        %1493 = vmatpush.msra.mxu0 %v731
        %1494 = vmatpush.msra.mxu0 %v728
        %1495 = vmatpush.msra.mxu0 %v725
        %1496 = vmatpush.msra.mxu0 %v722
        %1497 = vmatpush.msra.mxu0 %v719
        %1498 = vmatpush.msra.mxu0 %v716
        %1499 = vmatpush.msra.mxu0 %v713
        %1500 = vmatpush.msra.mxu0 %v710
        %1501 = vmatmul.f32.gmra.mxu0 %v1463
        %v1502 = vpop.f32.mrf.mxu0
        %v1503 = vadd.f32 %v760, %v1502
        %1504 = vdwg.mxu0
        %1505 = vmatpush.msra.mxu0 %v756
        %1506 = vmatpush.msra.mxu0 %v753
        %1507 = vmatpush.msra.mxu0 %v750
        %1508 = vmatpush.msra.mxu0 %v747
        %1509 = vmatpush.msra.mxu0 %v744
        %1510 = vmatpush.msra.mxu0 %v741
        %1511 = vmatpush.msra.mxu0 %v738
        %1512 = vmatpush.msra.mxu0 %v735
        %1513 = vmatpush.msra.mxu0 %v732
        %1514 = vmatpush.msra.mxu0 %v729
        %1515 = vmatpush.msra.mxu0 %v726
        %1516 = vmatpush.msra.mxu0 %v723
        %1517 = vmatpush.msra.mxu0 %v720
        %1518 = vmatpush.msra.mxu0 %v717
        %1519 = vmatpush.msra.mxu0 %v714
        %1520 = vmatpush.msra.mxu0 %v711
        %1521 = vmatmul.f32.gmra.mxu0 %v1463
        %v1522 = vpop.f32.mrf.mxu0
        %v1523 = vadd.f32 %v761, %v1522
        %1524 = vdwg.mxu0
        %v1526 = vrot.slane %v1483, 4
        %v1528 = vadd.f32 %v661, %v1526
        %v1529 = vxor.u32 %v1528, 2147483648
        %v1530 = vmul.f32 %v1529, 1.442695
        %v1531 = vpow.pop %v1530
        %v1532 = vadd.f32 %v1531, 1.0
        %v1533 = vrcp.pop %v1532
        %v1534 = vmul.f32 %v1532, %v1533
        %v1535 = vsub.f32 1.0, %v1534
        %v1536 = vmul.f32 %v1533, %v1535
        %v1537 = vadd.f32 %v1533, %v1536
        %vm1538 = vweird.f32 %v1532
        %vm1539 = vweird.f32 %v1533
        %vm1540 = vmor %vm1538, %vm1539
        %v1541 = vsel %vm1540, %v1533, %v1537
        %v1542 = vand.u32 2147483647, %v1532
        %vm1543 = vcmp.eq.f32.partialorder %v1542, 8.507059e+37
        %v1544 = vand.u32 %v1532, 2147483648
        %v1545 = vor.u32 1.1754944e-38, %v1544
        %v1546 = vsel %vm1543, %v1545, %v1541
        %v1547 = vmul.f32 1.0, %v1546
        %v1549 = vrot.slane %v1503, 4
        %v1551 = vadd.f32 %v684, %v1549
        %v1552 = vxor.u32 %v1551, 2147483648
        %v1553 = vmul.f32 %v1552, 1.442695
        %v1554 = vpow.pop %v1553
        %v1555 = vadd.f32 %v1554, 1.0
        %v1556 = vrcp.pop %v1555
        %v1557 = vmul.f32 %v1555, %v1556
        %v1558 = vsub.f32 1.0, %v1557
        %v1559 = vmul.f32 %v1556, %v1558
        %v1560 = vadd.f32 %v1556, %v1559
        %vm1561 = vweird.f32 %v1555
        %vm1562 = vweird.f32 %v1556
        %vm1563 = vmor %vm1561, %vm1562
        %v1564 = vsel %vm1563, %v1556, %v1560
        %v1565 = vand.u32 2147483647, %v1555
        %vm1566 = vcmp.eq.f32.partialorder %v1565, 8.507059e+37
        %v1567 = vand.u32 %v1555, 2147483648
        %v1568 = vor.u32 1.1754944e-38, %v1567
        %v1569 = vsel %vm1566, %v1568, %v1564
        %v1570 = vmul.f32 1.0, %v1569
        %v1572 = vrot.slane %v1523, 4
        %v1574 = vmul.f32 %v1547, %v1572
        %v1575 = vadd.f32 %v707, %v1574
        %v1576 = vtanh.pop %v1575
        %v1577 = vsub.f32 1.0, %v1570
        %v1578 = vmul.f32 %v1577, %v1576
        %v1579 = vrot.slane %v1461, 6
        %v1581 = vmul.f32 %v1570, %v1579
        %v1582 = vadd.f32 %v1578, %v1581
        %v1584 = vrot.slane %v1582, 4
        %1586 = vmatpush.msra.mxu0 %v754
        %1587 = vmatpush.msra.mxu0 %v751
        %1588 = vmatpush.msra.mxu0 %v748
        %1589 = vmatpush.msra.mxu0 %v745
        %1590 = vmatpush.msra.mxu0 %v742
        %1591 = vmatpush.msra.mxu0 %v739
        %1592 = vmatpush.msra.mxu0 %v736
        %1593 = vmatpush.msra.mxu0 %v733
        %1594 = vmatpush.msra.mxu0 %v730
        %1595 = vmatpush.msra.mxu0 %v727
        %1596 = vmatpush.msra.mxu0 %v724
        %1597 = vmatpush.msra.mxu0 %v721
        %1598 = vmatpush.msra.mxu0 %v718
        %1599 = vmatpush.msra.mxu0 %v715
        %1600 = vmatpush.msra.mxu0 %v712
        %1601 = vmatpush.msra.mxu0 %v709
        %1602 = vmatmul.f32.gmra.mxu0 %v1584
        %v1603 = vpop.f32.mrf.mxu0
        %v1604 = vadd.f32 %v759, %v1603
        %1605 = vdwg.mxu0
        %1606 = vmatpush.msra.mxu0 %v755
        %1607 = vmatpush.msra.mxu0 %v752
        %1608 = vmatpush.msra.mxu0 %v749
        %1609 = vmatpush.msra.mxu0 %v746
        %1610 = vmatpush.msra.mxu0 %v743
        %1611 = vmatpush.msra.mxu0 %v740
        %1612 = vmatpush.msra.mxu0 %v737
        %1613 = vmatpush.msra.mxu0 %v734
        %1614 = vmatpush.msra.mxu0 %v731
        %1615 = vmatpush.msra.mxu0 %v728
        %1616 = vmatpush.msra.mxu0 %v725
        %1617 = vmatpush.msra.mxu0 %v722
        %1618 = vmatpush.msra.mxu0 %v719
        %1619 = vmatpush.msra.mxu0 %v716
        %1620 = vmatpush.msra.mxu0 %v713
        %1621 = vmatpush.msra.mxu0 %v710
        %1622 = vmatmul.f32.gmra.mxu0 %v1584
        %v1623 = vpop.f32.mrf.mxu0
        %v1624 = vadd.f32 %v760, %v1623
        %1625 = vdwg.mxu0
        %1626 = vmatpush.msra.mxu0 %v756
        %1627 = vmatpush.msra.mxu0 %v753
        %1628 = vmatpush.msra.mxu0 %v750
        %1629 = vmatpush.msra.mxu0 %v747
        %1630 = vmatpush.msra.mxu0 %v744
        %1631 = vmatpush.msra.mxu0 %v741
        %1632 = vmatpush.msra.mxu0 %v738
        %1633 = vmatpush.msra.mxu0 %v735
        %1634 = vmatpush.msra.mxu0 %v732
        %1635 = vmatpush.msra.mxu0 %v729
        %1636 = vmatpush.msra.mxu0 %v726
        %1637 = vmatpush.msra.mxu0 %v723
        %1638 = vmatpush.msra.mxu0 %v720
        %1639 = vmatpush.msra.mxu0 %v717
        %1640 = vmatpush.msra.mxu0 %v714
        %1641 = vmatpush.msra.mxu0 %v711
        %1642 = vmatmul.f32.gmra.mxu0 %v1584
        %v1643 = vpop.f32.mrf.mxu0
        %v1644 = vadd.f32 %v761, %v1643
        %1645 = vdwg.mxu0
        %v1647 = vrot.slane %v1604, 2
        %v1649 = vadd.f32 %v661, %v1647
        %v1650 = vxor.u32 %v1649, 2147483648
        %v1651 = vmul.f32 %v1650, 1.442695
        %v1652 = vpow.pop %v1651
        %v1653 = vadd.f32 %v1652, 1.0
        %v1654 = vrcp.pop %v1653
        %v1655 = vmul.f32 %v1653, %v1654
        %v1656 = vsub.f32 1.0, %v1655
        %v1657 = vmul.f32 %v1654, %v1656
        %v1658 = vadd.f32 %v1654, %v1657
        %vm1659 = vweird.f32 %v1653
        %vm1660 = vweird.f32 %v1654
        %vm1661 = vmor %vm1659, %vm1660
        %v1662 = vsel %vm1661, %v1654, %v1658
        %v1663 = vand.u32 2147483647, %v1653
        %vm1664 = vcmp.eq.f32.partialorder %v1663, 8.507059e+37
        %v1665 = vand.u32 %v1653, 2147483648
        %v1666 = vor.u32 1.1754944e-38, %v1665
        %v1667 = vsel %vm1664, %v1666, %v1662
        %v1668 = vmul.f32 1.0, %v1667
        %v1670 = vrot.slane %v1624, 2
        %v1672 = vadd.f32 %v684, %v1670
        %v1673 = vxor.u32 %v1672, 2147483648
        %v1674 = vmul.f32 %v1673, 1.442695
        %v1675 = vpow.pop %v1674
        %v1676 = vadd.f32 %v1675, 1.0
        %v1677 = vrcp.pop %v1676
        %v1678 = vmul.f32 %v1676, %v1677
        %v1679 = vsub.f32 1.0, %v1678
        %v1680 = vmul.f32 %v1677, %v1679
        %v1681 = vadd.f32 %v1677, %v1680
        %vm1682 = vweird.f32 %v1676
        %vm1683 = vweird.f32 %v1677
        %vm1684 = vmor %vm1682, %vm1683
        %v1685 = vsel %vm1684, %v1677, %v1681
        %v1686 = vand.u32 2147483647, %v1676
        %vm1687 = vcmp.eq.f32.partialorder %v1686, 8.507059e+37
        %v1688 = vand.u32 %v1676, 2147483648
        %v1689 = vor.u32 1.1754944e-38, %v1688
        %v1690 = vsel %vm1687, %v1689, %v1685
        %v1691 = vmul.f32 1.0, %v1690
        %v1693 = vrot.slane %v1644, 2
        %v1695 = vmul.f32 %v1668, %v1693
        %v1696 = vadd.f32 %v707, %v1695
        %v1697 = vtanh.pop %v1696
        %v1698 = vsub.f32 1.0, %v1691
        %v1699 = vmul.f32 %v1698, %v1697
        %v1700 = vrot.slane %v1582, 6
        %v1702 = vmul.f32 %v1691, %v1700
        %v1703 = vadd.f32 %v1699, %v1702
        %vm1704 = vcmask 1041408
        %v1705 = vsel %vm1704, %v871, %v990
        %vm1706 = vcmask 1043456
        %v1707 = vsel %vm1706, %v1705, %v1111
        %vm1708 = vcmask 1045504
        %v1709 = vsel %vm1708, %v1707, %v1232
        %v1710 = vsel %vm1704, %v1342, %v1461
        %v1711 = vsel %vm1706, %v1710, %v1582
        %v1712 = vsel %vm1708, %v1711, %v1703
        %v1713 = vld [vmem:[%s564] sm:$0xff]
        %v1714 = vld [vmem:[%s564 + $0x8] sm:$0xff]
        %v1715 = vld [vmem:[%s564 + $0x10] sm:$0xff]
        %v1716 = vld [vmem:[%s564 + $0x18] sm:$0xff]
        %v1717 = vld [vmem:[%s564 + $0x20] sm:$0xff]
        %v1718 = vld [vmem:[%s564 + $0x28] sm:$0xff]
        %v1719 = vld [vmem:[%s564 + $0x30] sm:$0xff]
        %v1720 = vld [vmem:[%s564 + $0x38] sm:$0xff]
        %v1721 = vld [vmem:[%s564 + $0x40] sm:$0xff]
        %v1722 = vld [vmem:[%s564 + $0x48] sm:$0xff]
        %v1723 = vld [vmem:[%s564 + $0x50] sm:$0xff]
        %v1724 = vld [vmem:[%s564 + $0x58] sm:$0xff]
        %v1725 = vld [vmem:[%s564 + $0x60] sm:$0xff]
        %v1726 = vld [vmem:[%s564 + $0x68] sm:$0xff]
        %v1727 = vld [vmem:[%s564 + $0x70] sm:$0xff]
        %v1728 = vld [vmem:[%s564 + $0x78] sm:$0xff]
        %v1729 = vld [vmem:[%s564 + $0x80] sm:$0xff]
        %v1730 = vld [vmem:[%s564 + $0x88] sm:$0xff]
        %v1731 = vld [vmem:[%s564 + $0x90] sm:$0xff]
        %v1732 = vld [vmem:[%s564 + $0x98] sm:$0xff]
        %v1733 = vld [vmem:[%s564 + $0xa0] sm:$0xff]
        %v1734 = vld [vmem:[%s564 + $0xa8] sm:$0xff]
        %v1735 = vld [vmem:[%s564 + $0xb0] sm:$0xff]
        %v1736 = vld [vmem:[%s564 + $0xb8] sm:$0xff]
        %v1737 = vld [vmem:[%s564 + $0xc0] sm:$0xff]
        %v1738 = vld [vmem:[%s564 + $0xc8] sm:$0xff]
        %v1739 = vld [vmem:[%s564 + $0xd0] sm:$0xff]
        %v1740 = vld [vmem:[%s564 + $0xd8] sm:$0xff]
        %v1741 = vld [vmem:[%s564 + $0xe0] sm:$0xff]
        %v1742 = vld [vmem:[%s564 + $0xe8] sm:$0xff]
        %v1743 = vld [vmem:[%s564 + $0xf0] sm:$0xff]
        %v1744 = vld [vmem:[%s564 + $0xf8] sm:$0xff]
        %v1745 = vld [vmem:[%s564 + $0x100] sm:$0xff]
        %v1746 = vld [vmem:[%s564 + $0x108] sm:$0xff]
        %v1747 = vld [vmem:[%s564 + $0x110] sm:$0xff]
        %v1748 = vld [vmem:[%s564 + $0x118] sm:$0xff]
        %v1749 = vld [vmem:[%s564 + $0x120] sm:$0xff]
        %v1750 = vld [vmem:[%s564 + $0x128] sm:$0xff]
        %v1751 = vld [vmem:[%s564 + $0x130] sm:$0xff]
        %v1752 = vld [vmem:[%s564 + $0x138] sm:$0xff]
        %v1753 = vld [vmem:[%s564 + $0x140] sm:$0xff]
        %v1754 = vld [vmem:[%s564 + $0x148] sm:$0xff]
        %v1755 = vld [vmem:[%s564 + $0x150] sm:$0xff]
        %v1756 = vld [vmem:[%s564 + $0x158] sm:$0xff]
        %v1757 = vld [vmem:[%s564 + $0x160] sm:$0xff]
        %v1758 = vld [vmem:[%s564 + $0x168] sm:$0xff]
        %v1759 = vld [vmem:[%s564 + $0x170] sm:$0xff]
        %v1760 = vld [vmem:[%s564 + $0x178] sm:$0xff]
        %v1761 = vld [vmem:[%s564 + $0x180] sm:$0xff]
        %v1762 = vld [vmem:[%s564 + $0x188] sm:$0xff]
        %v1763 = vld [vmem:[%s564 + $0x190] sm:$0xff]
        %v1764 = vld [vmem:[%s564 + $0x198] sm:$0xff]
        %v1765 = vld [vmem:[%s564 + $0x1a0] sm:$0xff]
        %v1766 = vld [vmem:[%s564 + $0x1a8] sm:$0xff]
        %v1767 = vld [vmem:[%s564 + $0x1b0] sm:$0xff]
        %v1768 = vld [vmem:[%s564 + $0x1b8] sm:$0xff]
        %v1769 = vld [vmem:[%s564 + $0x1c0] sm:$0xff]
        %v1770 = vld [vmem:[%s564 + $0x1c8] sm:$0xff]
        %v1771 = vld [vmem:[%s564 + $0x1d0] sm:$0xff]
        %v1772 = vld [vmem:[%s564 + $0x1d8] sm:$0xff]
        %v1773 = vld [vmem:[%s564 + $0x1e0] sm:$0xff]
        %v1774 = vld [vmem:[%s564 + $0x1e8] sm:$0xff]
        %v1775 = vld [vmem:[%s564 + $0x1f0] sm:$0xff]
        %v1776 = vld [vmem:[%s564 + $0x1f8] sm:$0xff]
        %v1777 = vld [vmem:[%s568] sm:$0xf]
        %v1779 = vperm.slane %v1777, 0
        %v1780 = vperm.slane %v1777, 1
        %v1781 = vperm.slane %v1777, 2
        %v1782 = vperm.slane %v1777, 3
        %1787 = vmatpush.msra.mxu0 %v1773
        %1788 = vmatpush.msra.mxu0 %v1769
        %1789 = vmatpush.msra.mxu0 %v1765
        %1790 = vmatpush.msra.mxu0 %v1761
        %1791 = vmatpush.msra.mxu0 %v1757
        %1792 = vmatpush.msra.mxu0 %v1753
        %1793 = vmatpush.msra.mxu0 %v1749
        %1794 = vmatpush.msra.mxu0 %v1745
        %1795 = vmatpush.msra.mxu0 %v1741
        %1796 = vmatpush.msra.mxu0 %v1737
        %1797 = vmatpush.msra.mxu0 %v1733
        %1798 = vmatpush.msra.mxu0 %v1729
        %1799 = vmatpush.msra.mxu0 %v1725
        %1800 = vmatpush.msra.mxu0 %v1721
        %1801 = vmatpush.msra.mxu0 %v1717
        %1802 = vmatpush.msra.mxu0 %v1713
        %1803 = vmatmul.f32.gmra.mxu0 %v1709
        %v1804 = vpop.f32.mrf.mxu0
        %v1805 = vadd.f32 %v1779, %v1804
        %1806 = vmatmul.f32.gmra.mxu0 %v1712
        %v1807 = vpop.f32.mrf.mxu0
        %v1808 = vadd.f32 %v1779, %v1807
        %1809 = vdwg.mxu0
        %1810 = vmatpush.msra.mxu0 %v1774
        %1811 = vmatpush.msra.mxu0 %v1770
        %1812 = vmatpush.msra.mxu0 %v1766
        %1813 = vmatpush.msra.mxu0 %v1762
        %1814 = vmatpush.msra.mxu0 %v1758
        %1815 = vmatpush.msra.mxu0 %v1754
        %1816 = vmatpush.msra.mxu0 %v1750
        %1817 = vmatpush.msra.mxu0 %v1746
        %1818 = vmatpush.msra.mxu0 %v1742
        %1819 = vmatpush.msra.mxu0 %v1738
        %1820 = vmatpush.msra.mxu0 %v1734
        %1821 = vmatpush.msra.mxu0 %v1730
        %1822 = vmatpush.msra.mxu0 %v1726
        %1823 = vmatpush.msra.mxu0 %v1722
        %1824 = vmatpush.msra.mxu0 %v1718
        %1825 = vmatpush.msra.mxu0 %v1714
        %1826 = vmatmul.f32.gmra.mxu0 %v1709
        %v1827 = vpop.f32.mrf.mxu0
        %v1828 = vadd.f32 %v1780, %v1827
        %1829 = vmatmul.f32.gmra.mxu0 %v1712
        %v1830 = vpop.f32.mrf.mxu0
        %v1831 = vadd.f32 %v1780, %v1830
        %1832 = vdwg.mxu0
        %1833 = vmatpush.msra.mxu0 %v1775
        %1834 = vmatpush.msra.mxu0 %v1771
        %1835 = vmatpush.msra.mxu0 %v1767
        %1836 = vmatpush.msra.mxu0 %v1763
        %1837 = vmatpush.msra.mxu0 %v1759
        %1838 = vmatpush.msra.mxu0 %v1755
        %1839 = vmatpush.msra.mxu0 %v1751
        %1840 = vmatpush.msra.mxu0 %v1747
        %1841 = vmatpush.msra.mxu0 %v1743
        %1842 = vmatpush.msra.mxu0 %v1739
        %1843 = vmatpush.msra.mxu0 %v1735
        %1844 = vmatpush.msra.mxu0 %v1731
        %1845 = vmatpush.msra.mxu0 %v1727
        %1846 = vmatpush.msra.mxu0 %v1723
        %1847 = vmatpush.msra.mxu0 %v1719
        %1848 = vmatpush.msra.mxu0 %v1715
        %1849 = vmatmul.f32.gmra.mxu0 %v1709
        %v1850 = vpop.f32.mrf.mxu0
        %v1851 = vadd.f32 %v1781, %v1850
        %1852 = vmatmul.f32.gmra.mxu0 %v1712
        %v1853 = vpop.f32.mrf.mxu0
        %v1854 = vadd.f32 %v1781, %v1853
        %1855 = vdwg.mxu0
        %1856 = vmatpush.msra.mxu0 %v1776
        %1857 = vmatpush.msra.mxu0 %v1772
        %1858 = vmatpush.msra.mxu0 %v1768
        %1859 = vmatpush.msra.mxu0 %v1764
        %1860 = vmatpush.msra.mxu0 %v1760
        %1861 = vmatpush.msra.mxu0 %v1756
        %1862 = vmatpush.msra.mxu0 %v1752
        %1863 = vmatpush.msra.mxu0 %v1748
        %1864 = vmatpush.msra.mxu0 %v1744
        %1865 = vmatpush.msra.mxu0 %v1740
        %1866 = vmatpush.msra.mxu0 %v1736
        %1867 = vmatpush.msra.mxu0 %v1732
        %1868 = vmatpush.msra.mxu0 %v1728
        %1869 = vmatpush.msra.mxu0 %v1724
        %1870 = vmatpush.msra.mxu0 %v1720
        %1871 = vmatpush.msra.mxu0 %v1716
        %1872 = vmatmul.f32.gmra.mxu0 %v1709
        %v1873 = vpop.f32.mrf.mxu0
        %v1874 = vadd.f32 %v1782, %v1873
        %1875 = vmatmul.f32.gmra.mxu0 %v1712
        %v1876 = vpop.f32.mrf.mxu0
        %v1877 = vadd.f32 %v1782, %v1876
        %1878 = vdwg.mxu0
        %v1879 = vmax.f32 %v1805, 0.0
        %v1880 = vmax.f32 %v1828, 0.0
        %v1881 = vmax.f32 %v1851, 0.0
        %v1882 = vmax.f32 %v1874, 0.0
        %v1883 = vmax.f32 %v1808, 0.0
        %v1884 = vmax.f32 %v1831, 0.0
        %v1885 = vmax.f32 %v1854, 0.0
        %v1886 = vmax.f32 %v1877, 0.0
        %v1887 = vld [vmem:[%s573] sm:$0xff]
        %v1888 = vld [vmem:[%s573 + $0x8] sm:$0xff]
        %v1889 = vld [vmem:[%s573 + $0x10] sm:$0xff]
        %v1890 = vld [vmem:[%s573 + $0x18] sm:$0xff]
        %v1891 = vld [vmem:[%s573 + $0x20] sm:$0xff]
        %v1892 = vld [vmem:[%s573 + $0x28] sm:$0xff]
        %v1893 = vld [vmem:[%s573 + $0x30] sm:$0xff]
        %v1894 = vld [vmem:[%s573 + $0x38] sm:$0xff]
        %v1895 = vld [vmem:[%s573 + $0x40] sm:$0xff]
        %v1896 = vld [vmem:[%s573 + $0x48] sm:$0xff]
        %v1897 = vld [vmem:[%s573 + $0x50] sm:$0xff]
        %v1898 = vld [vmem:[%s573 + $0x58] sm:$0xff]
        %v1899 = vld [vmem:[%s573 + $0x60] sm:$0xff]
        %v1900 = vld [vmem:[%s573 + $0x68] sm:$0xff]
        %v1901 = vld [vmem:[%s573 + $0x70] sm:$0xff]
        %v1902 = vld [vmem:[%s573 + $0x78] sm:$0xff]
        %v1903 = vld [vmem:[%s573 + $0x80] sm:$0xff]
        %v1904 = vld [vmem:[%s573 + $0x88] sm:$0xff]
        %v1905 = vld [vmem:[%s573 + $0x90] sm:$0xff]
        %v1906 = vld [vmem:[%s573 + $0x98] sm:$0xff]
        %v1907 = vld [vmem:[%s573 + $0xa0] sm:$0xff]
        %v1908 = vld [vmem:[%s573 + $0xa8] sm:$0xff]
        %v1909 = vld [vmem:[%s573 + $0xb0] sm:$0xff]
        %v1910 = vld [vmem:[%s573 + $0xb8] sm:$0xff]
        %v1911 = vld [vmem:[%s573 + $0xc0] sm:$0xff]
        %v1912 = vld [vmem:[%s573 + $0xc8] sm:$0xff]
        %v1913 = vld [vmem:[%s573 + $0xd0] sm:$0xff]
        %v1914 = vld [vmem:[%s573 + $0xd8] sm:$0xff]
        %v1915 = vld [vmem:[%s573 + $0xe0] sm:$0xff]
        %v1916 = vld [vmem:[%s573 + $0xe8] sm:$0xff]
        %v1917 = vld [vmem:[%s573 + $0xf0] sm:$0xff]
        %v1918 = vld [vmem:[%s573 + $0xf8] sm:$0xff]
        %v1919 = vld [vmem:[%s573 + $0x100] sm:$0xff]
        %v1920 = vld [vmem:[%s573 + $0x108] sm:$0xff]
        %v1921 = vld [vmem:[%s573 + $0x110] sm:$0xff]
        %v1922 = vld [vmem:[%s573 + $0x118] sm:$0xff]
        %v1923 = vld [vmem:[%s573 + $0x120] sm:$0xff]
        %v1924 = vld [vmem:[%s573 + $0x128] sm:$0xff]
        %v1925 = vld [vmem:[%s573 + $0x130] sm:$0xff]
        %v1926 = vld [vmem:[%s573 + $0x138] sm:$0xff]
        %v1927 = vld [vmem:[%s573 + $0x140] sm:$0xff]
        %v1928 = vld [vmem:[%s573 + $0x148] sm:$0xff]
        %v1929 = vld [vmem:[%s573 + $0x150] sm:$0xff]
        %v1930 = vld [vmem:[%s573 + $0x158] sm:$0xff]
        %v1931 = vld [vmem:[%s573 + $0x160] sm:$0xff]
        %v1932 = vld [vmem:[%s573 + $0x168] sm:$0xff]
        %v1933 = vld [vmem:[%s573 + $0x170] sm:$0xff]
        %v1934 = vld [vmem:[%s573 + $0x178] sm:$0xff]
        %v1935 = vld [vmem:[%s573 + $0x180] sm:$0xff]
        %v1936 = vld [vmem:[%s573 + $0x188] sm:$0xff]
        %v1937 = vld [vmem:[%s573 + $0x190] sm:$0xff]
        %v1938 = vld [vmem:[%s573 + $0x198] sm:$0xff]
        %v1939 = vld [vmem:[%s573 + $0x1a0] sm:$0xff]
        %v1940 = vld [vmem:[%s573 + $0x1a8] sm:$0xff]
        %v1941 = vld [vmem:[%s573 + $0x1b0] sm:$0xff]
        %v1942 = vld [vmem:[%s573 + $0x1b8] sm:$0xff]
        %v1943 = vld [vmem:[%s573 + $0x1c0] sm:$0xff]
        %v1944 = vld [vmem:[%s573 + $0x1c8] sm:$0xff]
        %v1945 = vld [vmem:[%s573 + $0x1d0] sm:$0xff]
        %v1946 = vld [vmem:[%s573 + $0x1d8] sm:$0xff]
        %v1947 = vld [vmem:[%s573 + $0x1e0] sm:$0xff]
        %v1948 = vld [vmem:[%s573 + $0x1e8] sm:$0xff]
        %v1949 = vld [vmem:[%s573 + $0x1f0] sm:$0xff]
        %v1950 = vld [vmem:[%s573 + $0x1f8] sm:$0xff]
        %v1951 = vld [vmem:[%s576] sm:$0x1]
        %v1953 = vperm.slane %v1951, 0
        %1955 = vmatpush.msra.mxu0 %v1902
        %1956 = vmatpush.msra.mxu0 %v1901
        %1957 = vmatpush.msra.mxu0 %v1900
        %1958 = vmatpush.msra.mxu0 %v1899
        %1959 = vmatpush.msra.mxu0 %v1898
        %1960 = vmatpush.msra.mxu0 %v1897
        %1961 = vmatpush.msra.mxu0 %v1896
        %1962 = vmatpush.msra.mxu0 %v1895
        %1963 = vmatpush.msra.mxu0 %v1894
        %1964 = vmatpush.msra.mxu0 %v1893
        %1965 = vmatpush.msra.mxu0 %v1892
        %1966 = vmatpush.msra.mxu0 %v1891
        %1967 = vmatpush.msra.mxu0 %v1890
        %1968 = vmatpush.msra.mxu0 %v1889
        %1969 = vmatpush.msra.mxu0 %v1888
        %1970 = vmatpush.msra.mxu0 %v1887
        %1971 = vmatmul.f32.gmra.mxu0 %v1879
        %v1972 = vpop.f32.mrf.mxu0
        %v1973 = vadd.f32 %v1953, %v1972
        %1974 = vmatmul.f32.gmra.mxu0 %v1883
        %v1975 = vpop.f32.mrf.mxu0
        %v1976 = vadd.f32 %v1953, %v1975
        %1977 = vdwg.mxu0
        %1978 = vmatpush.msra.mxu0 %v1918
        %1979 = vmatpush.msra.mxu0 %v1917
        %1980 = vmatpush.msra.mxu0 %v1916
        %1981 = vmatpush.msra.mxu0 %v1915
        %1982 = vmatpush.msra.mxu0 %v1914
        %1983 = vmatpush.msra.mxu0 %v1913
        %1984 = vmatpush.msra.mxu0 %v1912
        %1985 = vmatpush.msra.mxu0 %v1911
        %1986 = vmatpush.msra.mxu0 %v1910
        %1987 = vmatpush.msra.mxu0 %v1909
        %1988 = vmatpush.msra.mxu0 %v1908
        %1989 = vmatpush.msra.mxu0 %v1907
        %1990 = vmatpush.msra.mxu0 %v1906
        %1991 = vmatpush.msra.mxu0 %v1905
        %1992 = vmatpush.msra.mxu0 %v1904
        %1993 = vmatpush.msra.mxu0 %v1903
        %1994 = vmatmul.f32.gmra.mxu0 %v1880
        %v1995 = vpop.f32.mrf.mxu0
        %v1996 = vadd.f32 %v1973, %v1995
        %1997 = vmatmul.f32.gmra.mxu0 %v1884
        %v1998 = vpop.f32.mrf.mxu0
        %v1999 = vadd.f32 %v1976, %v1998
        %2000 = vdwg.mxu0
        %2001 = vmatpush.msra.mxu0 %v1934
        %2002 = vmatpush.msra.mxu0 %v1933
        %2003 = vmatpush.msra.mxu0 %v1932
        %2004 = vmatpush.msra.mxu0 %v1931
        %2005 = vmatpush.msra.mxu0 %v1930
        %2006 = vmatpush.msra.mxu0 %v1929
        %2007 = vmatpush.msra.mxu0 %v1928
        %2008 = vmatpush.msra.mxu0 %v1927
        %2009 = vmatpush.msra.mxu0 %v1926
        %2010 = vmatpush.msra.mxu0 %v1925
        %2011 = vmatpush.msra.mxu0 %v1924
        %2012 = vmatpush.msra.mxu0 %v1923
        %2013 = vmatpush.msra.mxu0 %v1922
        %2014 = vmatpush.msra.mxu0 %v1921
        %2015 = vmatpush.msra.mxu0 %v1920
        %2016 = vmatpush.msra.mxu0 %v1919
        %2017 = vmatmul.f32.gmra.mxu0 %v1881
        %v2018 = vpop.f32.mrf.mxu0
        %v2019 = vadd.f32 %v1996, %v2018
        %2020 = vmatmul.f32.gmra.mxu0 %v1885
        %v2021 = vpop.f32.mrf.mxu0
        %v2022 = vadd.f32 %v1999, %v2021
        %2023 = vdwg.mxu0
        %2024 = vmatpush.msra.mxu0 %v1950
        %2025 = vmatpush.msra.mxu0 %v1949
        %2026 = vmatpush.msra.mxu0 %v1948
        %2027 = vmatpush.msra.mxu0 %v1947
        %2028 = vmatpush.msra.mxu0 %v1946
        %2029 = vmatpush.msra.mxu0 %v1945
        %2030 = vmatpush.msra.mxu0 %v1944
        %2031 = vmatpush.msra.mxu0 %v1943
        %2032 = vmatpush.msra.mxu0 %v1942
        %2033 = vmatpush.msra.mxu0 %v1941
        %2034 = vmatpush.msra.mxu0 %v1940
        %2035 = vmatpush.msra.mxu0 %v1939
        %2036 = vmatpush.msra.mxu0 %v1938
        %2037 = vmatpush.msra.mxu0 %v1937
        %2038 = vmatpush.msra.mxu0 %v1936
        %2039 = vmatpush.msra.mxu0 %v1935
        %2040 = vmatmul.f32.gmra.mxu0 %v1882
        %v2041 = vpop.f32.mrf.mxu0
        %v2042 = vadd.f32 %v2019, %v2041
        %2043 = vmatmul.f32.gmra.mxu0 %v1886
        %v2044 = vpop.f32.mrf.mxu0
        %v2045 = vadd.f32 %v2022, %v2044
        %2046 = vdwg.mxu0
        %vm2047 = vcmask 7168
        %2048 = vst.msk [vmem:[%s581] sm:$0xff] %vm2047, %v2042
        %2049 = vst.msk [vmem:[%s581 + $0x8] sm:$0xff] %vm2047, %v2045
        %p2050 = scmp.lt.s32.totalorder %s29, 1
        %s2051 = scalar_select %p2050, %s29, 1
        %s2052 = smul.addr %s2051, 2
        %s2053 = smul.addr %s2052, 8
        %s2054 = scalar_lea.vmem %s9, %s2053
        // Predicated region
        $region77: #{tpu_custom_call.1} parent=55 // pred_check
          %p2055 = pneg %p281
        $region78: #{tpu_custom_call.1} parent=55 // pred_check_branch
          %2057 = sbr.rel (%p2055) target = $region80
        $region79: #{tpu_custom_call.1} parent=55 // pred_region
          _
        $region80: #{tpu_custom_call.1} parent=55 // pred_fallthru
          _
      $region56: #{tpu_custom_call.1} parent=5 // pred_fallthru
        _
      %p2058 = scmp.le.s32.totalorder 2, %s24
      // Predicated region
      $region81: #{tpu_custom_call.1} parent=5 // pred_check
        %p2059 = pneg %p2058
      $region82: #{tpu_custom_call.1} parent=5 // pred_check_branch
        %2061 = sbr.rel (%p2059) target = $region84
      $region83: #{tpu_custom_call.1} parent=5 // pred_region
        %s2062 = ssub.s32 %s24, 2
        // Predicated region
        $region85: #{tpu_custom_call.1} parent=83 // pred_check
          %p2063 = pneg %p287
        $region86: #{tpu_custom_call.1} parent=83 // pred_check_branch
          %2065 = sbr.rel (%p2063) target = $region88
        $region87: #{tpu_custom_call.1} parent=83 // pred_region
          %p2066 = scmp.lt.s32.totalorder %s30, 1
          %s2067 = scalar_select %p2066, %s30, 1
          %s2068 = smul.addr %s2067, 2
          %s2069 = smul.addr %s2068, 8
          %s2070 = scalar_lea.vmem %s9, %s2069
        $region88: #{tpu_custom_call.1} parent=83 // pred_fallthru
          _
      $region84: #{tpu_custom_call.1} parent=5 // pred_fallthru
        _
    $region6: #{tpu_custom_call.1} parent=1 // loop_footer
      %s28 = sadd.s32 1, %s24
    $region7: #{tpu_custom_call.1} parent=1 // loop_footer_branch
      %23 = sbr.rel target = $region3
    $region8: #{tpu_custom_call.1} parent=1 // loop_exit
      _
    %2071 = vsyncpa [#allocation3], 1
    %s2072 = scalar_lea.sflag [#allocation3], 1
    %2073 = vsyncpa %s2072, 1
    %2074 = vsyncpa [#allocation5], 1
    %s2075 = scalar_lea.sflag [#allocation5], 1
    %2076 = vsyncpa %s2075, 1
    %2077 = vsyncpa [#allocation8], 1
    %s2078 = scalar_lea.sflag [#allocation8], 1
    %2079 = vsyncpa %s2078, 1

</llo_original>
